<compile_context>
chip_gen: v6e
topology: v6e:2x2x1
jax: 0.10.0
libtpu: 0.0.40
codegen_flags: <defaults>
</compile_context>

<pallas_src>
import functools

import jax
import jax.numpy as jnp
import numpy as np
from jax.experimental import pallas as pl
from jax.experimental.pallas import tpu as pltpu


# --------------------------------------------------------------------------
# Tiling helpers / compiler params
# --------------------------------------------------------------------------
def _pick_lane_tile(hw, requested=None, cap=2048):
    """Lane-axis tile: a multiple of 128 that divides hw, or the full hw.

    TODO(synk): for hw not a multiple of 128 (e.g. 56*56) this falls back to a
    single full-HW block (no lane pipelining); padding the flattened axis and
    masking pad lanes would restore dense stores + pipelining for those shapes.
    """
    if requested is not None:
        if 0 < requested < hw and hw % requested == 0 and requested % 128 == 0:
            return requested
        return hw
    if hw <= cap or hw % 128 != 0:
        return hw
    for cand in range(cap, 127, -128):
        if hw % cand == 0:
            return cand
    return hw


def _pick_channel_tile(cc, hw, itemsize=4, target_bytes=2 << 20):
    """Channel tile for the depthwise conv: bound the (ct, HW) block to ~2 MiB
    so the double-buffered in/out working set stays far below the scoped-VMEM
    budget on every generation (v7x included) and the grid gets enough steps
    to pipeline and shard across TensorCores."""
    if cc % 8 == 0:
        divs = [d for d in range(8, cc + 1, 8) if cc % d == 0]   # full sublanes
    else:
        divs = [cc]           # tiny-dim models: keep the (sub-8) half intact
    fitting = [d for d in divs if d * hw * itemsize <= target_bytes]
    # TODO(synk): for very large H*W with a small dim//2, lane-axis tiling with
    # a one-row (+/-W) halo would be needed to bound VMEM further.
    return max(fitting) if fitting else min(divs)


@functools.lru_cache(maxsize=None)
def _vmem_limit_bytes():
    """Per-chip scoped-VMEM limit: ~100 MiB on 128-MiB parts (v5e/v6e), half of
    physical on 64-MiB parts (v7x) to leave headroom for compiler scratch."""
    try:
        cap = pltpu.get_tpu_info().vmem_capacity_bytes
    except Exception:
        return None           # unknown -> keep the compiler default
    if cap >= 128 * 1024 * 1024:
        return 100 * 1024 * 1024
    return cap // 2


def _compiler_params_2d():
    return pltpu.CompilerParams(
        dimension_semantics=("parallel", "parallel"),
        vmem_limit_bytes=_vmem_limit_bytes(),
    )


# --------------------------------------------------------------------------
# pre_norm stats + normalized FFT-half (x2).  x1 is NOT materialized; its
# normalization is fused into the depthwise-conv kernel below.
# --------------------------------------------------------------------------
def _prenorm_stats_kernel(x_ref, gb_ref, bb_ref, x2_ref, st_ref, *, eps):
    x = x_ref[...].astype(jnp.float32)            # (C, T)
    c = x.shape[0]
    cc = c // 2
    inv_c = 1.0 / c
    s1 = jnp.sum(x, axis=0, keepdims=True)
    s2 = jnp.sum(x * x, axis=0, keepdims=True)
    u = s1 * inv_c
    var = jnp.maximum(s2 * inv_c - u * u, 0.0)    # clamp against cancellation
    r = jax.lax.rsqrt(var + eps)
    xb = x[cc:, :]                                # second channel half -> FFT branch
    x2_ref[...] = ((xb - u) * r * gb_ref[...] + bb_ref[...]).astype(x2_ref.dtype)
    st_ref[...] = jnp.concatenate([u, r], axis=0).astype(st_ref.dtype)


def prenorm_stats_x2(x_flat, gamma, beta, *, eps=1e-6, lane_tile=None):
    """x_flat: (B, C, H*W).  Returns (x2, stats):
       x2    (B, C//2, H*W) float32  -- normalized second channel half
       stats (B, 2, H*W)    float32  -- [mean; rstd] per spatial position."""
    B, C, HW = x_flat.shape
    Cc = C // 2
    T = _pick_lane_tile(HW, lane_tile)
    gb = gamma[Cc:].reshape(Cc, 1).astype(jnp.float32)
    bb = beta[Cc:].reshape(Cc, 1).astype(jnp.float32)
    vec_spec = pl.BlockSpec((Cc, 1), lambda b, t: (0, 0))
    return pl.pallas_call(
        functools.partial(_prenorm_stats_kernel, eps=eps),
        out_shape=(jax.ShapeDtypeStruct((B, Cc, HW), jnp.float32),
                   jax.ShapeDtypeStruct((B, 2, HW), jnp.float32)),
        grid=(B, HW // T),
        in_specs=[
            pl.BlockSpec((None, C, T), lambda b, t: (b, 0, t)),   # x, once
            vec_spec, vec_spec,
        ],
        out_specs=(pl.BlockSpec((None, Cc, T), lambda b, t: (b, 0, t)),
                   pl.BlockSpec((None, 2, T), lambda b, t: (b, 0, t))),
        compiler_params=_compiler_params_2d(),
    )(x_flat, gb, bb)


# --------------------------------------------------------------------------
# Depthwise 3x3 conv (padding=1, groups=Cc, no bias) with the pre_norm of the
# first channel half fused in.  Flattened-lane layout; taps via pltpu.roll.
# --------------------------------------------------------------------------
def _dwconv_prenorm_kernel(x_ref, st_ref, g_ref, b_ref, w_ref, em_ref, o_ref, *, W):
    HW = o_ref.shape[-1]
    x = x_ref[...].astype(jnp.float32)            # (ct, HW) raw first-half channels
    mean = st_ref[0:1, :]                         # (1, HW)
    rstd = st_ref[1:2, :]                         # (1, HW)
    # Fused pre_norm (channels_first LayerNorm) + affine for this channel tile.
    xn = (x - mean) * rstd * g_ref[...] + b_ref[...]
    w = w_ref[...].astype(jnp.float32)            # (ct, 9)

    # Pre-masked sources (2 multiplies total, (1, HW) masks broadcast):
    #   x_l : zero where source col == W-1  -> used by all dx == -1 taps
    #   x_r : zero where source col == 0    -> used by all dx == +1 taps
    x_l = xn * em_ref[0:1, :]
    x_r = xn * em_ref[1:2, :]

    def row_taps(dy):
        # sum of the 3 taps of kernel row (dy+1); shifted[s] = src[s + dy*W + dx]
        d0 = dy * W
        t = (dy + 1) * 3
        left = pltpu.roll(x_l, (-(d0 - 1)) % HW, 1)
        mid = pltpu.roll(xn, (-d0) % HW, 1) if d0 != 0 else xn
        right = pltpu.roll(x_r, (-(d0 + 1)) % HW, 1)
        return (left * w[:, t:t + 1] + mid * w[:, t + 1:t + 2]
                + right * w[:, t + 2:t + 3])

    # Row masks applied once per dy-group (2 selects total, (1, HW) masks).
    lane = jax.lax.broadcasted_iota(jnp.int32, (1, HW), 1)
    acc = row_taps(0)
    acc = acc + jnp.where(lane >= W, row_taps(-1), 0.0)
    acc = acc + jnp.where(lane < HW - W, row_taps(1), 0.0)
    o_ref[...] = acc.astype(o_ref.dtype)


def dwconv3x3_prenorm(x_flat, stats, w, gamma_a, beta_a, H, W, *, channel_tile=None):
    """x_flat: (B, C, H*W) raw input; stats: (B, 2, H*W) [mean; rstd];
    w: (Cc, 3, 3).  Returns dw-conv(pre_norm(x)[:, :Cc]) as (B, Cc, H*W)."""
    del H  # row bounds are expressed via HW and W
    B, C, HW = x_flat.shape
    Cc = C // 2
    ct = channel_tile if channel_tile is not None else _pick_channel_tile(Cc, HW)
    assert Cc % ct == 0
    w9 = w.reshape(Cc, 9).astype(jnp.float32)
    ga = gamma_a.reshape(Cc, 1).astype(jnp.float32)
    ba = beta_a.reshape(Cc, 1).astype(jnp.float32)
    # Host-precomputed column edge masks (no in-kernel iota/rem for non-pow2 W).
    col = np.arange(HW, dtype=np.int64) % W
    em = np.stack([(col != W - 1), (col != 0)]).astype(np.float32)   # (2, HW)
    # TODO(synk): on v6e/v7x a bf16 data path (f32 accumulate) would halve the
    # conv DMA bytes; kept f32 everywhere so all generations match the reference.
    return pl.pallas_call(
        functools.partial(_dwconv_prenorm_kernel, W=W),
        out_shape=jax.ShapeDtypeStruct((B, Cc, HW), x_flat.dtype),
        grid=(B, Cc // ct),
        in_specs=[
            pl.BlockSpec((None, ct, HW), lambda b, c: (b, c, 0)),   # raw x[:, :Cc]
            pl.BlockSpec((None, 2, HW), lambda b, c: (b, 0, 0)),    # stats (resident over c)
            pl.BlockSpec((ct, 1), lambda b, c: (c, 0)),             # gamma (first half)
            pl.BlockSpec((ct, 1), lambda b, c: (c, 0)),             # beta  (first half)
            pl.BlockSpec((ct, 9), lambda b, c: (c, 0)),             # dw weights
            pl.BlockSpec((2, HW), lambda b, c: (0, 0)),             # edge masks (resident)
        ],
        out_specs=pl.BlockSpec((None, ct, HW), lambda b, c: (b, c, 0)),
        compiler_params=_compiler_params_2d(),
    )(x_flat, stats, ga, ba, w9, jnp.asarray(em))


# --------------------------------------------------------------------------
# post_norm fused with the even/odd channel interleave
# --------------------------------------------------------------------------
def _postnorm_interleave_kernel(y1_ref, y2_ref, ge_ref, go_ref, be_ref, bo_ref,
                                se_ref, so_ref, o_ref, *, eps):
    y1 = y1_ref[...].astype(jnp.float32)      # (Cc, T) -> even output channels
    y2 = y2_ref[...].astype(jnp.float32)      # (Cc, T) -> odd output channels
    cc = y1.shape[0]
    inv_c = 1.0 / (2 * cc)
    s1 = jnp.sum(y1, axis=0, keepdims=True) + jnp.sum(y2, axis=0, keepdims=True)
    s2 = (jnp.sum(y1 * y1, axis=0, keepdims=True)
          + jnp.sum(y2 * y2, axis=0, keepdims=True))
    u = s1 * inv_c
    var = jnp.maximum(s2 * inv_c - u * u, 0.0)
    r = jax.lax.rsqrt(var + eps)
    z_even = (y1 - u) * r * ge_ref[...] + be_ref[...]
    z_odd = (y2 - u) * r * go_ref[...] + bo_ref[...]
    # Interleave channels with (host-precomputed) 0/1 selector matmuls on the
    # MXU: out[2i] = z_even[i], out[2i+1] = z_odd[i]; keeps the output store a
    # single dense (C, T) block (no strided / masked sublane writes).
    # TODO(synk): on v5e with tiny C a VPU/XLU interleave may beat the MXU pop.
    out = jnp.dot(se_ref[...], z_even, preferred_element_type=jnp.float32)
    out = out + jnp.dot(so_ref[...], z_odd, preferred_element_type=jnp.float32)
    o_ref[...] = out.astype(o_ref.dtype)


def postnorm_interleave(y1, y2, gamma, beta, *, eps=1e-6, lane_tile=None):
    """y1/y2: (B, Cc, H*W).  Returns LayerNorm of the channel-interleaved stack
    [y1_0, y2_0, y1_1, y2_1, ...] as (B, 2*Cc, H*W)."""
    B, Cc, HW = y1.shape
    C = 2 * Cc
    T = _pick_lane_tile(HW, lane_tile)
    ge = gamma[0::2].reshape(Cc, 1).astype(jnp.float32)
    go = gamma[1::2].reshape(Cc, 1).astype(jnp.float32)
    be = beta[0::2].reshape(Cc, 1).astype(jnp.float32)
    bo = beta[1::2].reshape(Cc, 1).astype(jnp.float32)
    idx = np.arange(Cc)
    se = np.zeros((C, Cc), np.float32); se[2 * idx, idx] = 1.0
    so = np.zeros((C, Cc), np.float32); so[2 * idx + 1, idx] = 1.0
    vec_spec = pl.BlockSpec((Cc, 1), lambda b, t: (0, 0))
    sel_spec = pl.BlockSpec((C, Cc), lambda b, t: (0, 0))
    y_spec = pl.BlockSpec((None, Cc, T), lambda b, t: (b, 0, t))
    return pl.pallas_call(
        functools.partial(_postnorm_interleave_kernel, eps=eps),
        out_shape=jax.ShapeDtypeStruct((B, C, HW), y1.dtype),
        grid=(B, HW // T),
        in_specs=[y_spec, y_spec, vec_spec, vec_spec, vec_spec, vec_spec,
                  sel_spec, sel_spec],
        out_specs=pl.BlockSpec((None, C, T), lambda b, t: (b, 0, t)),
        compiler_params=_compiler_params_2d(),
    )(y1, y2, ge, go, be, bo, jnp.asarray(se), jnp.asarray(so))


# --------------------------------------------------------------------------
# GLF forward (Pallas kernels + FFT glue)
# --------------------------------------------------------------------------
def glf_forward(x, params, *, lane_tile=None, channel_tile=None):
    dw_w, cw, g1, b1, g2, b2 = params
    B, C, H, W = x.shape
    Cc = C // 2
    HW = H * W

    x_flat = x.reshape(B, C, HW)

    # pre_norm: per-position stats + normalized FFT half (Pallas).  x1 is not
    # written to HBM; its normalization is fused into the conv kernel.
    x2, stats = prenorm_stats_x2(x_flat, g1, b1, eps=1e-6, lane_tile=lane_tile)

    # local unit: fused (pre_norm of first half) + depthwise 3x3 (Pallas)
    y1 = dwconv3x3_prenorm(x_flat, stats, dw_w, g1[:Cc], b1[:Cc], H, W,
                           channel_tile=channel_tile)

    # global filter branch, kept in XLA so the complex multiply fuses with the
    # FFT epilogue (avoids real/imag HBM copies).
    # TODO(synk): rfft2/irfft2 have no Pallas/Mosaic primitive; they stay XLA ops.
    X = jnp.fft.rfft2(x2.reshape(B, Cc, H, W), axes=(2, 3), norm='ortho')
    # TODO(synk): bilinear interpolation of complex_weight for mismatched (h, w)
    # spectra is not implemented; weight is sized to match the rfft2 output.
    Wc = jax.lax.complex(cw[..., 0].astype(jnp.float32),
                         cw[..., 1].astype(jnp.float32))
    y2 = jnp.fft.irfft2(X * Wc, s=(H, W), axes=(2, 3), norm='ortho')
    y2 = y2.reshape(B, Cc, HW)

    # post_norm fused with the even/odd channel interleave (Pallas)
    out = postnorm_interleave(y1, y2, g2, b2, eps=1e-6, lane_tile=lane_tile)
    return out.reshape(B, C, H, W)


# --------------------------------------------------------------------------
# Pure-JAX reference (same semantics as the PyTorch module)
# --------------------------------------------------------------------------
def _layernorm_cf_ref(x, gamma, beta, eps=1e-6):
    u = jnp.mean(x, axis=1, keepdims=True)
    s = jnp.mean((x - u) ** 2, axis=1, keepdims=True)
    y = (x - u) / jnp.sqrt(s + eps)
    return y * gamma[None, :, None, None] + beta[None, :, None, None]


def glf_ref(x, params):
    dw_w, cw, g1, b1, g2, b2 = params
    B, C, H, W = x.shape
    Cc = C // 2
    xn = _layernorm_cf_ref(x, g1, b1)
    x1, x2 = xn[:, :Cc], xn[:, Cc:]
    y1 = jax.lax.conv_general_dilated(
        x1, dw_w[:, None, :, :], window_strides=(1, 1), padding='SAME',
        dimension_numbers=('NCHW', 'OIHW', 'NCHW'), feature_group_count=Cc)
    X = jnp.fft.rfft2(x2.astype(jnp.float32), axes=(2, 3), norm='ortho')
    Wc = cw[..., 0] + 1j * cw[..., 1]
    y2 = jnp.fft.irfft2(X * Wc, s=(H, W), axes=(2, 3), norm='ortho')
    y = jnp.stack([y1, y2.astype(y1.dtype)], axis=2).reshape(B, C, H, W)
    return _layernorm_cf_ref(y, g2, b2)


# --------------------------------------------------------------------------
if __name__ == "__main__":
    key = jax.random.PRNGKey(0)
    B, dim, H, W = 2, 16, 16, 16
    Cc = dim // 2
    h, w = H, W // 2 + 1          # sized to the rfft2 spectrum (no interpolation)

    k0, k1, k2, k3, k4, k5, k6 = jax.random.split(key, 7)
    x = jax.random.normal(k0, (B, dim, H, W), dtype=jnp.float32)

    # deterministic synthetic parameter init (shapes from the module __init__)
    dw_w = jax.random.normal(k1, (Cc, 3, 3), dtype=jnp.float32) * 0.1
    cw = jax.random.normal(k2, (Cc, h, w, 2), dtype=jnp.float32) * 0.02
    g1 = 1.0 + 0.1 * jax.random.normal(k3, (dim,), dtype=jnp.float32)
    b1 = 0.1 * jax.random.normal(k4, (dim,), dtype=jnp.float32)
    g2 = 1.0 + 0.1 * jax.random.normal(k5, (dim,), dtype=jnp.float32)
    b2 = 0.1 * jax.random.normal(k6, (dim,), dtype=jnp.float32)
    params = (dw_w, cw, g1, b1, g2, b2)

    fwd = jax.jit(functools.partial(glf_forward, lane_tile=128))
    out = jax.block_until_ready(fwd(x, params))
    ref = jax.block_until_ready(glf_ref(x, params))

    assert out.shape == (B, dim, H, W)
    np.testing.assert_allclose(np.asarray(out), np.asarray(ref),
                               rtol=1e-4, atol=1e-4)
    print("KERNEL_OK")
</pallas_src>

<mosaic_0001>
module attributes {stable_mosaic.version = 11 : i64} {
  func.func @_prenorm_stats_kernel(%arg0: i32, %arg1: i32, %arg2: memref<1x16x128xf32, #tpu.memory_space<vmem>>, %arg3: memref<8x1xf32, #tpu.memory_space<vmem>>, %arg4: memref<8x1xf32, #tpu.memory_space<vmem>>, %arg5: memref<1x8x128xf32, #tpu.memory_space<vmem>>, %arg6: memref<1x2x128xf32, #tpu.memory_space<vmem>>) attributes {dimension_semantics = [#tpu.dimension_semantics<parallel>, #tpu.dimension_semantics<parallel>], iteration_bounds = array<i64: 2, 2>, scalar_prefetch = 0 : i64, scratch_operands = 0 : i64, tpu.core_type = #tpu.core_type<tc>, window_params = [{transform_indices = @transform_0, window_bounds = array<i64: 1, 16, 128>}, {pipeline_mode = #tpu.pipeline_mode<synchronous>, transform_indices = @transform_1, window_bounds = array<i64: 8, 1>}, {pipeline_mode = #tpu.pipeline_mode<synchronous>, transform_indices = @transform_2, window_bounds = array<i64: 8, 1>}, {transform_indices = @transform_3, window_bounds = array<i64: 1, 8, 128>}, {transform_indices = @transform_4, window_bounds = array<i64: 1, 2, 128>}]} {
    %c0 = arith.constant 0 : index
    %c0_0 = arith.constant 0 : index
    %c0_1 = arith.constant 0 : index
    %0 = vector.load %arg2[%c0, %c0_0, %c0_1] : memref<1x16x128xf32, #tpu.memory_space<vmem>>, vector<1x16x128xf32>
    %1 = vector.shape_cast %0 : vector<1x16x128xf32> to vector<16x128xf32>
    %cst = arith.constant dense<0.000000e+00> : vector<128xf32>
    %2 = vector.multi_reduction <add>, %1, %cst [0] : vector<16x128xf32> to vector<128xf32>
    %3 = vector.shape_cast %2 : vector<128xf32> to vector<1x128xf32>
    %4 = arith.mulf %1, %1 : vector<16x128xf32>
    %cst_2 = arith.constant dense<0.000000e+00> : vector<128xf32>
    %5 = vector.multi_reduction <add>, %4, %cst_2 [0] : vector<16x128xf32> to vector<128xf32>
    %6 = vector.shape_cast %5 : vector<128xf32> to vector<1x128xf32>
    %cst_3 = arith.constant 6.250000e-02 : f32
    %7 = vector.broadcast %cst_3 : f32 to vector<1x128xf32>
    %8 = arith.mulf %3, %7 : vector<1x128xf32>
    %cst_4 = arith.constant 6.250000e-02 : f32
    %9 = vector.broadcast %cst_4 : f32 to vector<1x128xf32>
    %10 = arith.mulf %6, %9 : vector<1x128xf32>
    %11 = arith.mulf %8, %8 : vector<1x128xf32>
    %12 = arith.subf %10, %11 : vector<1x128xf32>
    %cst_5 = arith.constant 0.000000e+00 : f32
    %13 = vector.broadcast %cst_5 : f32 to vector<1x128xf32>
    %14 = arith.maximumf %12, %13 : vector<1x128xf32>
    %cst_6 = arith.constant 9.99999997E-7 : f32
    %15 = vector.broadcast %cst_6 : f32 to vector<1x128xf32>
    %16 = arith.addf %14, %15 : vector<1x128xf32>
    %17 = math.rsqrt %16 : vector<1x128xf32>
    %18 = vector.extract_strided_slice %1 {offsets = [8, 0], sizes = [8, 128], strides = [1, 1]} : vector<16x128xf32> to vector<8x128xf32>
    %19 = vector.broadcast %8 : vector<1x128xf32> to vector<8x128xf32>
    %20 = arith.subf %18, %19 : vector<8x128xf32>
    %21 = vector.broadcast %17 : vector<1x128xf32> to vector<8x128xf32>
    %22 = arith.mulf %20, %21 : vector<8x128xf32>
    %c0_7 = arith.constant 0 : index
    %c0_8 = arith.constant 0 : index
    %23 = vector.load %arg3[%c0_7, %c0_8] : memref<8x1xf32, #tpu.memory_space<vmem>>, vector<8x1xf32>
    %24 = vector.broadcast %23 : vector<8x1xf32> to vector<8x128xf32>
    %25 = arith.mulf %22, %24 : vector<8x128xf32>
    %c0_9 = arith.constant 0 : index
    %c0_10 = arith.constant 0 : index
    %26 = vector.load %arg4[%c0_9, %c0_10] : memref<8x1xf32, #tpu.memory_space<vmem>>, vector<8x1xf32>
    %27 = vector.broadcast %26 : vector<8x1xf32> to vector<8x128xf32>
    %28 = arith.addf %25, %27 : vector<8x128xf32>
    %c0_11 = arith.constant 0 : index
    %c0_12 = arith.constant 0 : index
    %c0_13 = arith.constant 0 : index
    %29 = vector.load %arg5[%c0_11, %c0_12, %c0_13] : memref<1x8x128xf32, #tpu.memory_space<vmem>>, vector<1x8x128xf32>
    %30 = vector.shape_cast %29 : vector<1x8x128xf32> to vector<8x128xf32>
    %31 = vector.shape_cast %28 : vector<8x128xf32> to vector<1x8x128xf32>
    tpu.vector_store %arg5[%c0_11, %c0_12, %c0_13], %31 {strides = array<i32>} : memref<1x8x128xf32, #tpu.memory_space<vmem>>, vector<1x8x128xf32>,
    %32 = tpu.concatenate %8, %17 in 0 : vector<1x128xf32>, vector<1x128xf32> -> vector<2x128xf32>
    %c0_14 = arith.constant 0 : index
    %c0_15 = arith.constant 0 : index
    %c0_16 = arith.constant 0 : index
    %33 = vector.load %arg6[%c0_14, %c0_15, %c0_16] : memref<1x2x128xf32, #tpu.memory_space<vmem>>, vector<1x2x128xf32>
    %34 = vector.shape_cast %33 : vector<1x2x128xf32> to vector<2x128xf32>
    %35 = vector.shape_cast %32 : vector<2x128xf32> to vector<1x2x128xf32>
    tpu.vector_store %arg6[%c0_14, %c0_15, %c0_16], %35 {strides = array<i32>} : memref<1x2x128xf32, #tpu.memory_space<vmem>>, vector<1x2x128xf32>,
    return
  }
  func.func @transform_0(%arg0: i32, %arg1: i32) -> (i32, i32, i32) {
    %c0_i32 = arith.constant 0 : i32
    %c0_i32_0 = arith.constant 0 : i32
    return %arg0, %c0_i32, %arg1 : i32, i32, i32
  }
  func.func @transform_1(%arg0: i32, %arg1: i32) -> (i32, i32) {
    %c0_i32 = arith.constant 0 : i32
    %c0_i32_0 = arith.constant 0 : i32
    %c0_i32_1 = arith.constant 0 : i32
    return %c0_i32, %c0_i32_0 : i32, i32
  }
  func.func @transform_2(%arg0: i32, %arg1: i32) -> (i32, i32) {
    %c0_i32 = arith.constant 0 : i32
    %c0_i32_0 = arith.constant 0 : i32
    %c0_i32_1 = arith.constant 0 : i32
    return %c0_i32, %c0_i32_0 : i32, i32
  }
  func.func @transform_3(%arg0: i32, %arg1: i32) -> (i32, i32, i32) {
    %c0_i32 = arith.constant 0 : i32
    %c0_i32_0 = arith.constant 0 : i32
    return %arg0, %c0_i32, %arg1 : i32, i32, i32
  }
  func.func @transform_4(%arg0: i32, %arg1: i32) -> (i32, i32, i32) {
    %c0_i32 = arith.constant 0 : i32
    %c0_i32_0 = arith.constant 0 : i32
    return %arg0, %c0_i32, %arg1 : i32, i32, i32
  }
}

module attributes {stable_mosaic.version = 11 : i64} {
  func.func @_dwconv_prenorm_kernel(%arg0: i32, %arg1: i32, %arg2: memref<1x8x256xf32, #tpu.memory_space<vmem>>, %arg3: memref<1x2x256xf32, #tpu.memory_space<vmem>>, %arg4: memref<8x1xf32, #tpu.memory_space<vmem>>, %arg5: memref<8x1xf32, #tpu.memory_space<vmem>>, %arg6: memref<8x9xf32, #tpu.memory_space<vmem>>, %arg7: memref<2x256xf32, #tpu.memory_space<vmem>>, %arg8: memref<1x8x256xf32, #tpu.memory_space<vmem>>) attributes {dimension_semantics = [#tpu.dimension_semantics<parallel>, #tpu.dimension_semantics<parallel>], iteration_bounds = array<i64: 2, 1>, scalar_prefetch = 0 : i64, scratch_operands = 0 : i64, tpu.core_type = #tpu.core_type<tc>, window_params = [{transform_indices = @transform_0, window_bounds = array<i64: 1, 8, 256>}, {transform_indices = @transform_1, window_bounds = array<i64: 1, 2, 256>}, {transform_indices = @transform_2, window_bounds = array<i64: 8, 1>}, {transform_indices = @transform_3, window_bounds = array<i64: 8, 1>}, {transform_indices = @transform_4, window_bounds = array<i64: 8, 9>}, {pipeline_mode = #tpu.pipeline_mode<synchronous>, transform_indices = @transform_5, window_bounds = array<i64: 2, 256>}, {transform_indices = @transform_6, window_bounds = array<i64: 1, 8, 256>}]} {
    %c0 = arith.constant 0 : index
    %c0_0 = arith.constant 0 : index
    %c0_1 = arith.constant 0 : index
    %0 = vector.load %arg2[%c0, %c0_0, %c0_1] : memref<1x8x256xf32, #tpu.memory_space<vmem>>, vector<1x8x256xf32>
    %1 = vector.shape_cast %0 : vector<1x8x256xf32> to vector<8x256xf32>
    %c0_2 = arith.constant 0 : index
    %c0_3 = arith.constant 0 : index
    %c0_4 = arith.constant 0 : index
    %2 = vector.load %arg3[%c0_2, %c0_3, %c0_4] : memref<1x2x256xf32, #tpu.memory_space<vmem>>, vector<1x1x256xf32>
    %3 = vector.shape_cast %2 : vector<1x1x256xf32> to vector<1x256xf32>
    %c0_5 = arith.constant 0 : index
    %c1 = arith.constant 1 : index
    %c0_6 = arith.constant 0 : index
    %4 = vector.load %arg3[%c0_5, %c1, %c0_6] : memref<1x2x256xf32, #tpu.memory_space<vmem>>, vector<1x1x256xf32>
    %5 = vector.shape_cast %4 : vector<1x1x256xf32> to vector<1x256xf32>
    %6 = vector.broadcast %3 : vector<1x256xf32> to vector<8x256xf32>
    %7 = arith.subf %1, %6 : vector<8x256xf32>
    %8 = vector.broadcast %5 : vector<1x256xf32> to vector<8x256xf32>
    %9 = arith.mulf %7, %8 : vector<8x256xf32>
    %c0_7 = arith.constant 0 : index
    %c0_8 = arith.constant 0 : index
    %10 = vector.load %arg4[%c0_7, %c0_8] : memref<8x1xf32, #tpu.memory_space<vmem>>, vector<8x1xf32>
    %11 = vector.broadcast %10 : vector<8x1xf32> to vector<8x256xf32>
    %12 = arith.mulf %9, %11 : vector<8x256xf32>
    %c0_9 = arith.constant 0 : index
    %c0_10 = arith.constant 0 : index
    %13 = vector.load %arg5[%c0_9, %c0_10] : memref<8x1xf32, #tpu.memory_space<vmem>>, vector<8x1xf32>
    %14 = vector.broadcast %13 : vector<8x1xf32> to vector<8x256xf32>
    %15 = arith.addf %12, %14 : vector<8x256xf32>
    %c0_11 = arith.constant 0 : index
    %c0_12 = arith.constant 0 : index
    %16 = vector.load %arg6[%c0_11, %c0_12] : memref<8x9xf32, #tpu.memory_space<vmem>>, vector<8x9xf32>
    %c0_13 = arith.constant 0 : index
    %c0_14 = arith.constant 0 : index
    %17 = vector.load %arg7[%c0_13, %c0_14] : memref<2x256xf32, #tpu.memory_space<vmem>>, vector<1x256xf32>
    %18 = vector.broadcast %17 : vector<1x256xf32> to vector<8x256xf32>
    %19 = arith.mulf %15, %18 : vector<8x256xf32>
    %c1_15 = arith.constant 1 : index
    %c0_16 = arith.constant 0 : index
    %20 = vector.load %arg7[%c1_15, %c0_16] : memref<2x256xf32, #tpu.memory_space<vmem>>, vector<1x256xf32>
    %21 = vector.broadcast %20 : vector<1x256xf32> to vector<8x256xf32>
    %22 = arith.mulf %15, %21 : vector<8x256xf32>
    %23 = tpu.iota {dimensions = array<i32: 1>} : vector<1x256xi32>
    %c1_i32 = arith.constant 1 : i32
    %24 = tpu.dynamic_rotate %19 by %c1_i32 dim 1 : vector<8x256xf32>, i32 -> vector<8x256xf32>
    %c255_i32 = arith.constant 255 : i32
    %25 = tpu.dynamic_rotate %22 by %c255_i32 dim 1 : vector<8x256xf32>, i32 -> vector<8x256xf32>
    %26 = vector.extract_strided_slice %16 {offsets = [0, 3], sizes = [8, 1], strides = [1, 1]} : vector<8x9xf32> to vector<8x1xf32>
    %27 = vector.broadcast %26 : vector<8x1xf32> to vector<8x256xf32>
    %28 = arith.mulf %24, %27 : vector<8x256xf32>
    %29 = vector.extract_strided_slice %16 {offsets = [0, 4], sizes = [8, 1], strides = [1, 1]} : vector<8x9xf32> to vector<8x1xf32>
    %30 = vector.broadcast %29 : vector<8x1xf32> to vector<8x256xf32>
    %31 = arith.mulf %15, %30 : vector<8x256xf32>
    %32 = arith.addf %28, %31 : vector<8x256xf32>
    %33 = vector.extract_strided_slice %16 {offsets = [0, 5], sizes = [8, 1], strides = [1, 1]} : vector<8x9xf32> to vector<8x1xf32>
    %34 = vector.broadcast %33 : vector<8x1xf32> to vector<8x256xf32>
    %35 = arith.mulf %25, %34 : vector<8x256xf32>
    %36 = arith.addf %32, %35 : vector<8x256xf32>
    %c16_i32 = arith.constant 16 : i32
    %37 = vector.broadcast %c16_i32 : i32 to vector<1x256xi32>
    %38 = arith.cmpi sge, %23, %37 : vector<1x256xi32>
    %c17_i32 = arith.constant 17 : i32
    %39 = tpu.dynamic_rotate %19 by %c17_i32 dim 1 : vector<8x256xf32>, i32 -> vector<8x256xf32>
    %c16_i32_17 = arith.constant 16 : i32
    %40 = tpu.dynamic_rotate %15 by %c16_i32_17 dim 1 : vector<8x256xf32>, i32 -> vector<8x256xf32>
    %c15_i32 = arith.constant 15 : i32
    %41 = tpu.dynamic_rotate %22 by %c15_i32 dim 1 : vector<8x256xf32>, i32 -> vector<8x256xf32>
    %42 = vector.extract_strided_slice %16 {offsets = [0, 0], sizes = [8, 1], strides = [1, 1]} : vector<8x9xf32> to vector<8x1xf32>
    %43 = vector.broadcast %42 : vector<8x1xf32> to vector<8x256xf32>
    %44 = arith.mulf %39, %43 : vector<8x256xf32>
    %45 = vector.extract_strided_slice %16 {offsets = [0, 1], sizes = [8, 1], strides = [1, 1]} : vector<8x9xf32> to vector<8x1xf32>
    %46 = vector.broadcast %45 : vector<8x1xf32> to vector<8x256xf32>
    %47 = arith.mulf %40, %46 : vector<8x256xf32>
    %48 = arith.addf %44, %47 : vector<8x256xf32>
    %49 = vector.extract_strided_slice %16 {offsets = [0, 2], sizes = [8, 1], strides = [1, 1]} : vector<8x9xf32> to vector<8x1xf32>
    %50 = vector.broadcast %49 : vector<8x1xf32> to vector<8x256xf32>
    %51 = arith.mulf %41, %50 : vector<8x256xf32>
    %52 = arith.addf %48, %51 : vector<8x256xf32>
    %cst = arith.constant 0.000000e+00 : f32
    %53 = vector.shape_cast %38 : vector<1x256xi1> to vector<1x256xi1>
    %54 = vector.broadcast %53 : vector<1x256xi1> to vector<8x256xi1>
    %55 = vector.broadcast %cst : f32 to vector<8x256xf32>
    %56 = arith.select %54, %52, %55 : vector<8x256xi1>, vector<8x256xf32>
    %57 = arith.addf %36, %56 : vector<8x256xf32>
    %c240_i32 = arith.constant 240 : i32
    %58 = vector.broadcast %c240_i32 : i32 to vector<1x256xi32>
    %59 = arith.cmpi slt, %23, %58 : vector<1x256xi32>
    %c241_i32 = arith.constant 241 : i32
    %60 = tpu.dynamic_rotate %19 by %c241_i32 dim 1 : vector<8x256xf32>, i32 -> vector<8x256xf32>
    %c240_i32_18 = arith.constant 240 : i32
    %61 = tpu.dynamic_rotate %15 by %c240_i32_18 dim 1 : vector<8x256xf32>, i32 -> vector<8x256xf32>
    %c239_i32 = arith.constant 239 : i32
    %62 = tpu.dynamic_rotate %22 by %c239_i32 dim 1 : vector<8x256xf32>, i32 -> vector<8x256xf32>
    %63 = vector.extract_strided_slice %16 {offsets = [0, 6], sizes = [8, 1], strides = [1, 1]} : vector<8x9xf32> to vector<8x1xf32>
    %64 = vector.broadcast %63 : vector<8x1xf32> to vector<8x256xf32>
    %65 = arith.mulf %60, %64 : vector<8x256xf32>
    %66 = vector.extract_strided_slice %16 {offsets = [0, 7], sizes = [8, 1], strides = [1, 1]} : vector<8x9xf32> to vector<8x1xf32>
    %67 = vector.broadcast %66 : vector<8x1xf32> to vector<8x256xf32>
    %68 = arith.mulf %61, %67 : vector<8x256xf32>
    %69 = arith.addf %65, %68 : vector<8x256xf32>
    %70 = vector.extract_strided_slice %16 {offsets = [0, 8], sizes = [8, 1], strides = [1, 1]} : vector<8x9xf32> to vector<8x1xf32>
    %71 = vector.broadcast %70 : vector<8x1xf32> to vector<8x256xf32>
    %72 = arith.mulf %62, %71 : vector<8x256xf32>
    %73 = arith.addf %69, %72 : vector<8x256xf32>
    %cst_19 = arith.constant 0.000000e+00 : f32
    %74 = vector.shape_cast %59 : vector<1x256xi1> to vector<1x256xi1>
    %75 = vector.broadcast %74 : vector<1x256xi1> to vector<8x256xi1>
    %76 = vector.broadcast %cst_19 : f32 to vector<8x256xf32>
    %77 = arith.select %75, %73, %76 : vector<8x256xi1>, vector<8x256xf32>
    %78 = arith.addf %57, %77 : vector<8x256xf32>
    %c0_20 = arith.constant 0 : index
    %c0_21 = arith.constant 0 : index
    %c0_22 = arith.constant 0 : index
    %79 = vector.load %arg8[%c0_20, %c0_21, %c0_22] : memref<1x8x256xf32, #tpu.memory_space<vmem>>, vector<1x8x256xf32>
    %80 = vector.shape_cast %79 : vector<1x8x256xf32> to vector<8x256xf32>
    %81 = vector.shape_cast %78 : vector<8x256xf32> to vector<1x8x256xf32>
    tpu.vector_store %arg8[%c0_20, %c0_21, %c0_22], %81 {strides = array<i32>} : memref<1x8x256xf32, #tpu.memory_space<vmem>>, vector<1x8x256xf32>,
    return
  }
  func.func @transform_0(%arg0: i32, %arg1: i32) -> (i32, i32, i32) {
    %c0_i32 = arith.constant 0 : i32
    %c0_i32_0 = arith.constant 0 : i32
    return %arg0, %arg1, %c0_i32 : i32, i32, i32
  }
  func.func @transform_1(%arg0: i32, %arg1: i32) -> (i32, i32, i32) {
    %c0_i32 = arith.constant 0 : i32
    %c0_i32_0 = arith.constant 0 : i32
    %c0_i32_1 = arith.constant 0 : i32
    return %arg0, %c0_i32, %c0_i32_0 : i32, i32, i32
  }
  func.func @transform_2(%arg0: i32, %arg1: i32) -> (i32, i32) {
    %c0_i32 = arith.constant 0 : i32
    %c0_i32_0 = arith.constant 0 : i32
    return %arg1, %c0_i32 : i32, i32
  }
  func.func @transform_3(%arg0: i32, %arg1: i32) -> (i32, i32) {
    %c0_i32 = arith.constant 0 : i32
    %c0_i32_0 = arith.constant 0 : i32
    return %arg1, %c0_i32 : i32, i32
  }
  func.func @transform_4(%arg0: i32, %arg1: i32) -> (i32, i32) {
    %c0_i32 = arith.constant 0 : i32
    %c0_i32_0 = arith.constant 0 : i32
    return %arg1, %c0_i32 : i32, i32
  }
  func.func @transform_5(%arg0: i32, %arg1: i32) -> (i32, i32) {
    %c0_i32 = arith.constant 0 : i32
    %c0_i32_0 = arith.constant 0 : i32
    %c0_i32_1 = arith.constant 0 : i32
    return %c0_i32, %c0_i32_0 : i32, i32
  }
  func.func @transform_6(%arg0: i32, %arg1: i32) -> (i32, i32, i32) {
    %c0_i32 = arith.constant 0 : i32
    %c0_i32_0 = arith.constant 0 : i32
    return %arg0, %arg1, %c0_i32 : i32, i32, i32
  }
}

module attributes {stable_mosaic.version = 11 : i64} {
  func.func @_postnorm_interleave_kernel(%arg0: i32, %arg1: i32, %arg2: memref<1x8x128xf32, #tpu.memory_space<vmem>>, %arg3: memref<1x8x128xf32, #tpu.memory_space<vmem>>, %arg4: memref<8x1xf32, #tpu.memory_space<vmem>>, %arg5: memref<8x1xf32, #tpu.memory_space<vmem>>, %arg6: memref<8x1xf32, #tpu.memory_space<vmem>>, %arg7: memref<8x1xf32, #tpu.memory_space<vmem>>, %arg8: memref<16x8xf32, #tpu.memory_space<vmem>>, %arg9: memref<16x8xf32, #tpu.memory_space<vmem>>, %arg10: memref<1x16x128xf32, #tpu.memory_space<vmem>>) attributes {dimension_semantics = [#tpu.dimension_semantics<parallel>, #tpu.dimension_semantics<parallel>], iteration_bounds = array<i64: 2, 2>, scalar_prefetch = 0 : i64, scratch_operands = 0 : i64, tpu.core_type = #tpu.core_type<tc>, window_params = [{transform_indices = @transform_0, window_bounds = array<i64: 1, 8, 128>}, {transform_indices = @transform_1, window_bounds = array<i64: 1, 8, 128>}, {pipeline_mode = #tpu.pipeline_mode<synchronous>, transform_indices = @transform_2, window_bounds = array<i64: 8, 1>}, {pipeline_mode = #tpu.pipeline_mode<synchronous>, transform_indices = @transform_3, window_bounds = array<i64: 8, 1>}, {pipeline_mode = #tpu.pipeline_mode<synchronous>, transform_indices = @transform_4, window_bounds = array<i64: 8, 1>}, {pipeline_mode = #tpu.pipeline_mode<synchronous>, transform_indices = @transform_5, window_bounds = array<i64: 8, 1>}, {pipeline_mode = #tpu.pipeline_mode<synchronous>, transform_indices = @transform_6, window_bounds = array<i64: 16, 8>}, {pipeline_mode = #tpu.pipeline_mode<synchronous>, transform_indices = @transform_7, window_bounds = array<i64: 16, 8>}, {transform_indices = @transform_8, window_bounds = array<i64: 1, 16, 128>}]} {
    %c0 = arith.constant 0 : index
    %c0_0 = arith.constant 0 : index
    %c0_1 = arith.constant 0 : index
    %0 = vector.load %arg2[%c0, %c0_0, %c0_1] : memref<1x8x128xf32, #tpu.memory_space<vmem>>, vector<1x8x128xf32>
    %1 = vector.shape_cast %0 : vector<1x8x128xf32> to vector<8x128xf32>
    %c0_2 = arith.constant 0 : index
    %c0_3 = arith.constant 0 : index
    %c0_4 = arith.constant 0 : index
    %2 = vector.load %arg3[%c0_2, %c0_3, %c0_4] : memref<1x8x128xf32, #tpu.memory_space<vmem>>, vector<1x8x128xf32>
    %3 = vector.shape_cast %2 : vector<1x8x128xf32> to vector<8x128xf32>
    %cst = arith.constant dense<0.000000e+00> : vector<128xf32>
    %4 = vector.multi_reduction <add>, %1, %cst [0] : vector<8x128xf32> to vector<128xf32>
    %5 = vector.shape_cast %4 : vector<128xf32> to vector<1x128xf32>
    %cst_5 = arith.constant dense<0.000000e+00> : vector<128xf32>
    %6 = vector.multi_reduction <add>, %3, %cst_5 [0] : vector<8x128xf32> to vector<128xf32>
    %7 = vector.shape_cast %6 : vector<128xf32> to vector<1x128xf32>
    %8 = arith.addf %5, %7 : vector<1x128xf32>
    %9 = arith.mulf %1, %1 : vector<8x128xf32>
    %cst_6 = arith.constant dense<0.000000e+00> : vector<128xf32>
    %10 = vector.multi_reduction <add>, %9, %cst_6 [0] : vector<8x128xf32> to vector<128xf32>
    %11 = vector.shape_cast %10 : vector<128xf32> to vector<1x128xf32>
    %12 = arith.mulf %3, %3 : vector<8x128xf32>
    %cst_7 = arith.constant dense<0.000000e+00> : vector<128xf32>
    %13 = vector.multi_reduction <add>, %12, %cst_7 [0] : vector<8x128xf32> to vector<128xf32>
    %14 = vector.shape_cast %13 : vector<128xf32> to vector<1x128xf32>
    %15 = arith.addf %11, %14 : vector<1x128xf32>
    %cst_8 = arith.constant 6.250000e-02 : f32
    %16 = vector.broadcast %cst_8 : f32 to vector<1x128xf32>
    %17 = arith.mulf %8, %16 : vector<1x128xf32>
    %cst_9 = arith.constant 6.250000e-02 : f32
    %18 = vector.broadcast %cst_9 : f32 to vector<1x128xf32>
    %19 = arith.mulf %15, %18 : vector<1x128xf32>
    %20 = arith.mulf %17, %17 : vector<1x128xf32>
    %21 = arith.subf %19, %20 : vector<1x128xf32>
    %cst_10 = arith.constant 0.000000e+00 : f32
    %22 = vector.broadcast %cst_10 : f32 to vector<1x128xf32>
    %23 = arith.maximumf %21, %22 : vector<1x128xf32>
    %cst_11 = arith.constant 9.99999997E-7 : f32
    %24 = vector.broadcast %cst_11 : f32 to vector<1x128xf32>
    %25 = arith.addf %23, %24 : vector<1x128xf32>
    %26 = math.rsqrt %25 : vector<1x128xf32>
    %27 = vector.broadcast %17 : vector<1x128xf32> to vector<8x128xf32>
    %28 = arith.subf %1, %27 : vector<8x128xf32>
    %29 = vector.broadcast %26 : vector<1x128xf32> to vector<8x128xf32>
    %30 = arith.mulf %28, %29 : vector<8x128xf32>
    %c0_12 = arith.constant 0 : index
    %c0_13 = arith.constant 0 : index
    %31 = vector.load %arg4[%c0_12, %c0_13] : memref<8x1xf32, #tpu.memory_space<vmem>>, vector<8x1xf32>
    %32 = vector.broadcast %31 : vector<8x1xf32> to vector<8x128xf32>
    %33 = arith.mulf %30, %32 : vector<8x128xf32>
    %c0_14 = arith.constant 0 : index
    %c0_15 = arith.constant 0 : index
    %34 = vector.load %arg6[%c0_14, %c0_15] : memref<8x1xf32, #tpu.memory_space<vmem>>, vector<8x1xf32>
    %35 = vector.broadcast %34 : vector<8x1xf32> to vector<8x128xf32>
    %36 = arith.addf %33, %35 : vector<8x128xf32>
    %37 = vector.broadcast %17 : vector<1x128xf32> to vector<8x128xf32>
    %38 = arith.subf %3, %37 : vector<8x128xf32>
    %39 = vector.broadcast %26 : vector<1x128xf32> to vector<8x128xf32>
    %40 = arith.mulf %38, %39 : vector<8x128xf32>
    %c0_16 = arith.constant 0 : index
    %c0_17 = arith.constant 0 : index
    %41 = vector.load %arg5[%c0_16, %c0_17] : memref<8x1xf32, #tpu.memory_space<vmem>>, vector<8x1xf32>
    %42 = vector.broadcast %41 : vector<8x1xf32> to vector<8x128xf32>
    %43 = arith.mulf %40, %42 : vector<8x128xf32>
    %c0_18 = arith.constant 0 : index
    %c0_19 = arith.constant 0 : index
    %44 = vector.load %arg7[%c0_18, %c0_19] : memref<8x1xf32, #tpu.memory_space<vmem>>, vector<8x1xf32>
    %45 = vector.broadcast %44 : vector<8x1xf32> to vector<8x128xf32>
    %46 = arith.addf %43, %45 : vector<8x128xf32>
    %c0_20 = arith.constant 0 : index
    %c0_21 = arith.constant 0 : index
    %47 = vector.load %arg8[%c0_20, %c0_21] : memref<16x8xf32, #tpu.memory_space<vmem>>, vector<16x8xf32>
    %cst_22 = arith.constant dense<0.000000e+00> : vector<16x128xf32>
    %48 = tpu.matmul %47, %36, %cst_22 {dimension_numbers = #tpu.dot_dimension_numbers<[1], [0], [0], [1], [0, 0, 1, 1], [], []>} : vector<16x8xf32>, vector<8x128xf32>, vector<16x128xf32> -> vector<16x128xf32>
    %c0_23 = arith.constant 0 : index
    %c0_24 = arith.constant 0 : index
    %49 = vector.load %arg9[%c0_23, %c0_24] : memref<16x8xf32, #tpu.memory_space<vmem>>, vector<16x8xf32>
    %cst_25 = arith.constant dense<0.000000e+00> : vector<16x128xf32>
    %50 = tpu.matmul %49, %46, %cst_25 {dimension_numbers = #tpu.dot_dimension_numbers<[1], [0], [0], [1], [0, 0, 1, 1], [], []>} : vector<16x8xf32>, vector<8x128xf32>, vector<16x128xf32> -> vector<16x128xf32>
    %51 = arith.addf %48, %50 : vector<16x128xf32>
    %c0_26 = arith.constant 0 : index
    %c0_27 = arith.constant 0 : index
    %c0_28 = arith.constant 0 : index
    %52 = vector.load %arg10[%c0_26, %c0_27, %c0_28] : memref<1x16x128xf32, #tpu.memory_space<vmem>>, vector<1x16x128xf32>
    %53 = vector.shape_cast %52 : vector<1x16x128xf32> to vector<16x128xf32>
    %54 = vector.shape_cast %51 : vector<16x128xf32> to vector<1x16x128xf32>
    tpu.vector_store %arg10[%c0_26, %c0_27, %c0_28], %54 {strides = array<i32>} : memref<1x16x128xf32, #tpu.memory_space<vmem>>, vector<1x16x128xf32>,
    return
  }
  func.func @transform_0(%arg0: i32, %arg1: i32) -> (i32, i32, i32) {
    %c0_i32 = arith.constant 0 : i32
    %c0_i32_0 = arith.constant 0 : i32
    return %arg0, %c0_i32, %arg1 : i32, i32, i32
  }
  func.func @transform_1(%arg0: i32, %arg1: i32) -> (i32, i32, i32) {
    %c0_i32 = arith.constant 0 : i32
    %c0_i32_0 = arith.constant 0 : i32
    return %arg0, %c0_i32, %arg1 : i32, i32, i32
  }
  func.func @transform_2(%arg0: i32, %arg1: i32) -> (i32, i32) {
    %c0_i32 = arith.constant 0 : i32
    %c0_i32_0 = arith.constant 0 : i32
    %c0_i32_1 = arith.constant 0 : i32
    return %c0_i32, %c0_i32_0 : i32, i32
  }
  func.func @transform_3(%arg0: i32, %arg1: i32) -> (i32, i32) {
    %c0_i32 = arith.constant 0 : i32
    %c0_i32_0 = arith.constant 0 : i32
    %c0_i32_1 = arith.constant 0 : i32
    return %c0_i32, %c0_i32_0 : i32, i32
  }
  func.func @transform_4(%arg0: i32, %arg1: i32) -> (i32, i32) {
    %c0_i32 = arith.constant 0 : i32
    %c0_i32_0 = arith.constant 0 : i32
    %c0_i32_1 = arith.constant 0 : i32
    return %c0_i32, %c0_i32_0 : i32, i32
  }
  func.func @transform_5(%arg0: i32, %arg1: i32) -> (i32, i32) {
    %c0_i32 = arith.constant 0 : i32
    %c0_i32_0 = arith.constant 0 : i32
    %c0_i32_1 = arith.constant 0 : i32
    return %c0_i32, %c0_i32_0 : i32, i32
  }
  func.func @transform_6(%arg0: i32, %arg1: i32) -> (i32, i32) {
    %c0_i32 = arith.constant 0 : i32
    %c0_i32_0 = arith.constant 0 : i32
    %c0_i32_1 = arith.constant 0 : i32
    return %c0_i32, %c0_i32_0 : i32, i32
  }
  func.func @transform_7(%arg0: i32, %arg1: i32) -> (i32, i32) {
    %c0_i32 = arith.constant 0 : i32
    %c0_i32_0 = arith.constant 0 : i32
    %c0_i32_1 = arith.constant 0 : i32
    return %c0_i32, %c0_i32_0 : i32, i32
  }
  func.func @transform_8(%arg0: i32, %arg1: i32) -> (i32, i32, i32) {
    %c0_i32 = arith.constant 0 : i32
    %c0_i32_0 = arith.constant 0 : i32
    return %arg0, %c0_i32, %arg1 : i32, i32, i32
  }
}

</mosaic_0001>

<llo_original>
// kernel: glf_forward.3
$region0: #{glf_forward.3}
  #allocation0 [shape = 'u32[]', space=smem, size = 0x4, offset = 0x4, fixed_abs, tag = 'smem constant byte address 0x4 - core index']
  #allocation1 [shape = 'u32[144,128]{1,0:T(1,128)}', space=vmem, size = 0x12000, scoped, tag = 'internal scratch']
  %s0 = inlined_call_operand.vmem [shape: f32[2,16,256], index: 0, kind: input, shape index: {}]
  %s1 = inlined_call_operand.vmem [shape: f32[8,1], index: 1, kind: input, shape index: {}]
  %s2 = inlined_call_operand.vmem [shape: f32[8,1], index: 2, kind: input, shape index: {}]
  %s3 = inlined_call_operand.vmem [shape: f32[2,8,256], index: 3, kind: output, shape index: {0}]
  %s4 = inlined_call_operand.vmem [shape: f32[2,2,256], index: 4, kind: output, shape index: {1}]
  %5 = xla_tuple %s3, %s4
  %s6 = sld [smem:[#allocation0]]
  $region91: #{glf_forward.3} parent=0
    _
  %s8 = ssub.s32 1, %s6
  %s9 = scalar_select 0, %s8, %s6
  $region1: #{glf_forward.3} parent=0
    #allocation2 [shape = 'u8[16384]{0}', space=vmem, size = 0x4000, scoped, tag = 'input window, operand 0']
    loop: start=0, step=1, limit=6
    $region2: #{glf_forward.3} parent=1 // loop_pre_header
      _
    $region3: #{glf_forward.3} parent=1 // loop_header
      %s11 = sphi 0, %s15
      %p12 = scmp.ge.s32.totalorder %s11, 6
      %s18 = sphi 0, %s30
      %s19 = sphi 0, %s26
      %s20 = sphi 0, %s18
      %s21 = sphi 0, %s19
      %s22 = sphi 0, %s20
      %s23 = sphi 0, %s21
      %s35 = sphi 0, %s37
      %s38 = sphi 0, %s35
      %s39 = sphi 0, %s38
      %s55 = sphi 0, %s39
      %s59 = sphi 0, %s59
      %s61 = sphi 0, %s59
      %s62 = sphi 0, %s61
      %s76 = sphi 0, %s62
      %s80 = sphi 0, %s80
      %s82 = sphi 0, %s80
      %s83 = sphi 0, %s82
      %s97 = sphi 0, %s83
      %s105 = sphi 0, %s107
      %s108 = sphi 0, %s105
      %s109 = sphi 0, %s108
      %s125 = sphi 0, %s109
      %s133 = sphi 0, %s135
      %s136 = sphi 0, %s133
      %s137 = sphi 0, %s136
      %s153 = sphi 0, %s137
    $region4: #{glf_forward.3} parent=1 // loop_header_branch
      %14 = sbr.rel (%p12) target = $region8
    $region5: #{glf_forward.3} parent=1 // loop_body
      %s16 = ssub.s32 %s11, 1
      %s17 = ssub.s32 %s11, 2
      %s24 = sadd.s32 1, %s19
      %p25 = scmp.ge.s32.totalorder %s24, 2
      %s26 = scalar_select %p25, 0, %s24
      %s27 = sadd.s32 1, %s18
      %s28 = scalar_select %p25, %s27, %s18
      %p29 = scmp.ge.s32.totalorder %s28, 2
      %s30 = scalar_select %p29, 0, %s28
      %s31 = ssub.s32 %s18, %s30
      %s32 = ssub.s32 %s19, %s26
      %s33 = sor.u32 %s31, %s32
      %p34 = scmp.eq.s32.totalorder %s33, 0
      %s36 = sadd.s32 %s35, 1
      %s37 = scalar_select %p34, %s35, %s36
      %p40 = pneg %p34
      %p41 = scmp.eq.s32.totalorder %s11, 3
      %p42 = por %p40, %p41
      %p43 = scmp.ne.s32.totalorder %s35, %s38
      %p44 = scmp.eq.s32.totalorder %s11, 0
      %p45 = por %p43, %p44
      %p46 = scmp.ne.s32.totalorder %s35, %s38
      %p47 = scmp.eq.s32.totalorder %s16, 3
      %p48 = por %p46, %p47
      %p49 = scmp.ne.s32.totalorder %s38, %s39
      %p50 = scmp.eq.s32.totalorder %s16, 0
      %p51 = por %p49, %p50
      %p52 = scmp.ne.s32.totalorder %s38, %s39
      %p53 = scmp.eq.s32.totalorder %s17, 3
      %p54 = por %p52, %p53
      %p56 = scmp.ne.s32.totalorder %s39, %s55
      %p57 = scmp.eq.s32.totalorder %s17, 0
      %p58 = por %p56, %p57
      %s60 = sadd.s32 %s59, 1
      %p63 = scmp.eq.s32.totalorder %s11, 3
      %p64 = scmp.ne.s32.totalorder %s59, %s61
      %p65 = scmp.eq.s32.totalorder %s11, 0
      %p66 = por %p64, %p65
      %p67 = scmp.ne.s32.totalorder %s59, %s61
      %p68 = scmp.eq.s32.totalorder %s16, 3
      %p69 = por %p67, %p68
      %p70 = scmp.ne.s32.totalorder %s61, %s62
      %p71 = scmp.eq.s32.totalorder %s16, 0
      %p72 = por %p70, %p71
      %p73 = scmp.ne.s32.totalorder %s61, %s62
      %p74 = scmp.eq.s32.totalorder %s17, 3
      %p75 = por %p73, %p74
      %p77 = scmp.ne.s32.totalorder %s62, %s76
      %p78 = scmp.eq.s32.totalorder %s17, 0
      %p79 = por %p77, %p78
      %s81 = sadd.s32 %s80, 1
      %p84 = scmp.eq.s32.totalorder %s11, 3
      %p85 = scmp.ne.s32.totalorder %s80, %s82
      %p86 = scmp.eq.s32.totalorder %s11, 0
      %p87 = por %p85, %p86
      %p88 = scmp.ne.s32.totalorder %s80, %s82
      %p89 = scmp.eq.s32.totalorder %s16, 3
      %p90 = por %p88, %p89
      %p91 = scmp.ne.s32.totalorder %s82, %s83
      %p92 = scmp.eq.s32.totalorder %s16, 0
      %p93 = por %p91, %p92
      %p94 = scmp.ne.s32.totalorder %s82, %s83
      %p95 = scmp.eq.s32.totalorder %s17, 3
      %p96 = por %p94, %p95
      %p98 = scmp.ne.s32.totalorder %s83, %s97
      %p99 = scmp.eq.s32.totalorder %s17, 0
      %p100 = por %p98, %p99
      %s101 = ssub.s32 %s18, %s30
      %s102 = ssub.s32 %s19, %s26
      %s103 = sor.u32 %s101, %s102
      %p104 = scmp.eq.s32.totalorder %s103, 0
      %s106 = sadd.s32 %s105, 1
      %s107 = scalar_select %p104, %s105, %s106
      %p110 = pneg %p104
      %p111 = scmp.eq.s32.totalorder %s11, 3
      %p112 = por %p110, %p111
      %p113 = scmp.ne.s32.totalorder %s105, %s108
      %p114 = scmp.eq.s32.totalorder %s11, 0
      %p115 = por %p113, %p114
      %p116 = scmp.ne.s32.totalorder %s105, %s108
      %p117 = scmp.eq.s32.totalorder %s16, 3
      %p118 = por %p116, %p117
      %p119 = scmp.ne.s32.totalorder %s108, %s109
      %p120 = scmp.eq.s32.totalorder %s16, 0
      %p121 = por %p119, %p120
      %p122 = scmp.ne.s32.totalorder %s108, %s109
      %p123 = scmp.eq.s32.totalorder %s17, 3
      %p124 = por %p122, %p123
      %p126 = scmp.ne.s32.totalorder %s109, %s125
      %p127 = scmp.eq.s32.totalorder %s17, 0
      %p128 = por %p126, %p127
      %s129 = ssub.s32 %s18, %s30
      %s130 = ssub.s32 %s19, %s26
      %s131 = sor.u32 %s129, %s130
      %p132 = scmp.eq.s32.totalorder %s131, 0
      %s134 = sadd.s32 %s133, 1
      %s135 = scalar_select %p132, %s133, %s134
      %p138 = pneg %p132
      %p139 = scmp.eq.s32.totalorder %s11, 3
      %p140 = por %p138, %p139
      %p141 = scmp.ne.s32.totalorder %s133, %s136
      %p142 = scmp.eq.s32.totalorder %s11, 0
      %p143 = por %p141, %p142
      %p144 = scmp.ne.s32.totalorder %s133, %s136
      %p145 = scmp.eq.s32.totalorder %s16, 3
      %p146 = por %p144, %p145
      %p147 = scmp.ne.s32.totalorder %s136, %s137
      %p148 = scmp.eq.s32.totalorder %s16, 0
      %p149 = por %p147, %p148
      %p150 = scmp.ne.s32.totalorder %s136, %s137
      %p151 = scmp.eq.s32.totalorder %s17, 3
      %p152 = por %p150, %p151
      %p154 = scmp.ne.s32.totalorder %s137, %s153
      %p155 = scmp.eq.s32.totalorder %s17, 0
      %p156 = por %p154, %p155
      %p157 = scmp.le.s32.totalorder 1, %s11
      %p158 = scmp.lt.s32.totalorder %s11, 5
      %p159 = pnand %p157, %p158
      %p160 = pneg %p159
      // Predicated region
      $region9: #{glf_forward.3} parent=5 // pred_check
        _
      $region10: #{glf_forward.3} parent=5 // pred_check_branch
        %162 = sbr.rel (%p159) target = $region12
      $region11: #{glf_forward.3} parent=5 // pred_region
        %s163 = ssub.s32 %s11, 1
        // Predicated region
        $region13: #{glf_forward.3} parent=11 // pred_check
          %p164 = pneg %p72
        $region14: #{glf_forward.3} parent=11 // pred_check_branch
          %166 = sbr.rel (%p164) target = $region16
        $region15: #{glf_forward.3} parent=11 // pred_region
          _
        $region16: #{glf_forward.3} parent=11 // pred_fallthru
          _
        // Predicated region
        $region17: #{glf_forward.3} parent=11 // pred_check
          %p167 = pneg %p93
        $region18: #{glf_forward.3} parent=11 // pred_check_branch
          %169 = sbr.rel (%p167) target = $region20
        $region19: #{glf_forward.3} parent=11 // pred_region
          _
        $region20: #{glf_forward.3} parent=11 // pred_fallthru
          _
      $region12: #{glf_forward.3} parent=5 // pred_fallthru
        _
      %p170 = scmp.lt.s32.totalorder %s11, 4
      // Predicated region
      $region21: #{glf_forward.3} parent=5 // pred_check
        %p171 = pneg %p170
      $region22: #{glf_forward.3} parent=5 // pred_check_branch
        %173 = sbr.rel (%p171) target = $region24
      $region23: #{glf_forward.3} parent=5 // pred_region
        // Predicated region
        $region25: #{glf_forward.3} parent=23 // pred_check
          %p174 = pneg %p45
        $region26: #{glf_forward.3} parent=23 // pred_check_branch
          %176 = sbr.rel (%p174) target = $region28
        $region27: #{glf_forward.3} parent=23 // pred_region
          %s177 = sand.u32 %s35, 1
          %s178 = sand.u32 %s35, 1
          %s179 = smul.addr %s178, 16
          %s180 = scalar_lea.vmem [#allocation2], %s179
          %s181 = smul.addr %s18, 4
          %s182 = sadd.s32 %s19, %s181
          %s183 = smul.addr %s182, 8
          %s184 = scalar_lea.vmem %s0, %s183
          // Predicated region
          $region29: #{glf_forward.3} parent=27 // pred_check
            _
          $region30: #{glf_forward.3} parent=27 // pred_check_branch
            %186 = sbr.rel (0) target = $region32
          $region31: #{glf_forward.3} parent=27 // pred_region
            // Predicated region
            $region33: #{glf_forward.3} parent=31 // pred_check
              _
            $region34: #{glf_forward.3} parent=31 // pred_check_branch
              %188 = sbr.rel (0) target = $region36
            $region35: #{glf_forward.3} parent=31 // pred_region
              // Predicated region
              $region48: #{glf_forward.3} parent=35 // pred_check
                _
              $region49: #{glf_forward.3} parent=35 // pred_check_branch
                %206 = sbr.rel (0) target = $region51
              $region50: #{glf_forward.3} parent=35 // pred_region
                loop: start=0, step=1, limit=1
                $region52: #{glf_forward.3} parent=50 // loop_pre_header
                  _
                $region53: #{glf_forward.3} parent=50 // loop_header
                  %s208 = sphi 0, %s212
                  %p209 = scmp.ge.s32.totalorder %s208, 1
                  %s213 = sphi %s184, %s184
                  %s214 = sphi %s180, %s180
                $region54: #{glf_forward.3} parent=50 // loop_header_branch
                  %211 = sbr.rel (%p209) target = $region58
                $region55: #{glf_forward.3} parent=50 // loop_body
                  %v215 = vld [vmem:[%s213] sm:$0xff]
                  %216 = vst [vmem:[%s214] sm:$0xff] %v215
                  %v217 = vld [vmem:[%s213 + $0x10] sm:$0xff]
                  %218 = vst [vmem:[%s214 + $0x8] sm:$0xff] %v217
                $region56: #{glf_forward.3} parent=50 // loop_footer
                  %s212 = sadd.s32 1, %s208
                $region57: #{glf_forward.3} parent=50 // loop_footer_branch
                  %207 = sbr.rel target = $region53
                $region58: #{glf_forward.3} parent=50 // loop_exit
                  _
              $region51: #{glf_forward.3} parent=35 // pred_fallthru
                _
              // Predicated region
              $region59: #{glf_forward.3} parent=35 // pred_check
                _
              $region60: #{glf_forward.3} parent=35 // pred_check_branch
                %220 = sbr.rel target = $region62
              $region61: #{glf_forward.3} parent=35 // pred_region
                _
              $region62: #{glf_forward.3} parent=35 // pred_fallthru
                _
            $region36: #{glf_forward.3} parent=31 // pred_fallthru
              _
            // Predicated region
            $region37: #{glf_forward.3} parent=31 // pred_check
              _
            $region38: #{glf_forward.3} parent=31 // pred_check_branch
              %190 = sbr.rel target = $region40
            $region39: #{glf_forward.3} parent=31 // pred_region
              %s192 = ssub.s32 256, 1
              loop: start=0, step=1, limit=1
              $region41: #{glf_forward.3} parent=39 // loop_pre_header
                _
              $region42: #{glf_forward.3} parent=39 // loop_header
                %s194 = sphi 0, %s198
                %p195 = scmp.ge.s32.totalorder %s194, 1
                %s199 = sphi %s184, %s184
                %s200 = sphi %s180, %s180
              $region43: #{glf_forward.3} parent=39 // loop_header_branch
                %197 = sbr.rel (%p195) target = $region47
              $region44: #{glf_forward.3} parent=39 // loop_body
                %v201 = vld [vmem:[%s199] sm:%s192]
                %202 = vst [vmem:[%s200] sm:%s192] %v201
                %v203 = vld [vmem:[%s199 + $0x10] sm:%s192]
                %204 = vst [vmem:[%s200 + $0x8] sm:%s192] %v203
              $region45: #{glf_forward.3} parent=39 // loop_footer
                %s198 = sadd.s32 1, %s194
              $region46: #{glf_forward.3} parent=39 // loop_footer_branch
                %193 = sbr.rel target = $region42
              $region47: #{glf_forward.3} parent=39 // loop_exit
                _
            $region40: #{glf_forward.3} parent=31 // pred_fallthru
              _
          $region32: #{glf_forward.3} parent=27 // pred_fallthru
            _
          %221 = vnop
        $region28: #{glf_forward.3} parent=23 // pred_fallthru
          _
      $region24: #{glf_forward.3} parent=5 // pred_fallthru
        _
      %p222 = scmp.le.s32.totalorder 1, %s11
      %p223 = scmp.lt.s32.totalorder %s11, 5
      %p224 = pnand %p222, %p223
      %p225 = pneg %p224
      // Predicated region
      $region63: #{glf_forward.3} parent=5 // pred_check
        _
      $region64: #{glf_forward.3} parent=5 // pred_check_branch
        %227 = sbr.rel (%p224) target = $region66
      $region65: #{glf_forward.3} parent=5 // pred_region
        %s228 = ssub.s32 %s11, 1
        %s229 = sand.u32 %s38, 1
        %s230 = sand.u32 %s38, 1
        %s231 = smul.addr %s230, 16
        %s232 = scalar_lea.vmem [#allocation2], %s231
        // Predicated region
        $region67: #{glf_forward.3} parent=65 // pred_check
          %p233 = pneg %p51
        $region68: #{glf_forward.3} parent=65 // pred_check_branch
          %235 = sbr.rel (%p233) target = $region70
        $region69: #{glf_forward.3} parent=65 // pred_region
          _
        $region70: #{glf_forward.3} parent=65 // pred_fallthru
          _
        %s236 = sand.u32 %s38, 1
        %s237 = sand.u32 %s38, 1
        %s238 = smul.addr %s237, 16
        %s239 = scalar_lea.vmem [#allocation2], %s238
        %p240 = pneg %p51
        %p241 = pneg %p48
        %p242 = pneg %p72
        %p243 = pneg %p69
        %p244 = pneg %p93
        %p245 = pneg %p90
        %p246 = pneg %p121
        %p247 = pneg %p118
        %p248 = scmp.lt.s32.totalorder %s20, 1
        %s249 = scalar_select %p248, %s20, 1
        %p250 = scmp.lt.s32.totalorder %s21, 1
        %s251 = scalar_select %p250, %s21, 1
        %s252 = smul.addr %s249, 2
        %s253 = sadd.s32 %s251, %s252
        %s254 = smul.addr %s253, 8
        %s255 = scalar_lea.vmem %s3, %s254
        %p256 = pneg %p149
        %p257 = pneg %p146
        %p258 = scmp.lt.s32.totalorder %s20, 1
        %s259 = scalar_select %p258, %s20, 1
        %p260 = scmp.lt.s32.totalorder %s21, 1
        %s261 = scalar_select %p260, %s21, 1
        %s262 = smul.addr %s259, 2
        %s263 = sadd.s32 %s261, %s262
        %s264 = smul.addr %s263, 2
        %s265 = scalar_lea.vmem %s4, %s264
        %p266 = scmp.lt.s32.totalorder %s20, 1
        %s267 = scalar_select %p266, %s20, 1
        %p268 = scmp.lt.s32.totalorder %s21, 1
        %s269 = scalar_select %p268, %s21, 1
        %s270 = smul.addr %s267, 2
        %s271 = sadd.s32 %s269, %s270
        %s272 = smul.addr %s271, 8
        %s273 = scalar_lea.vmem %s3, %s272
        %p274 = scmp.lt.s32.totalorder %s20, 1
        %s275 = scalar_select %p274, %s20, 1
        %p276 = scmp.lt.s32.totalorder %s21, 1
        %s277 = scalar_select %p276, %s21, 1
        %s278 = smul.addr %s275, 2
        %s279 = sadd.s32 %s277, %s278
        %s280 = smul.addr %s279, 2
        %s281 = scalar_lea.vmem %s4, %s280
        %v282 = vld [vmem:[%s232] sm:$0xff]
        %v283 = vld [vmem:[%s232 + $0x8] sm:$0xff]
        %v284 = vadd.f32 %v282, %v283
        %v285 = vrot.slane %v284, 4
        %v286 = vadd.f32 %v284, %v285
        %v287 = vrot.slane %v286, 2
        %v288 = vadd.f32 %v286, %v287
        %v289 = vrot.slane %v288, 1
        %v290 = vadd.f32 %v288, %v289
        %v291 = vmul.f32 %v282, %v282
        %v292 = vmul.f32 %v283, %v283
        %v293 = vadd.f32 %v291, %v292
        %v294 = vrot.slane %v293, 4
        %v295 = vadd.f32 %v293, %v294
        %v296 = vrot.slane %v295, 2
        %v297 = vadd.f32 %v295, %v296
        %v298 = vrot.slane %v297, 1
        %v299 = vadd.f32 %v297, %v298
        %v300 = vmul.f32 %v290, 0.0625
        %v301 = vmul.f32 %v299, 0.0625
        %v302 = vmul.f32 %v300, %v300
        %v303 = vsub.f32 %v301, %v302
        %v304 = vmax.f32 %v303, 0.0
        %v305 = vadd.f32 %v304, 1e-06
        %v306 = vrsqrt.pop %v305
        %v307 = vsub.f32 %v283, %v300
        %v308 = vmul.f32 %v307, %v306
        %v309 = vld [vmem:[%s1] sm:$0xff]
        %311 = vset.pattern.permute.xlu0 0
        %312 = vperm.xlu0 %311, %v309
        %v313 = vpop.permute.xlu0 %312
        %v315 = vmul.f32 %v308, %v313
        %v316 = vld [vmem:[%s2] sm:$0xff]
        %318 = vset.pattern.permute.xlu0 0
        %319 = vperm.xlu0 %318, %v316
        %v320 = vpop.permute.xlu0 %319
        %v322 = vadd.f32 %v315, %v320
        %323 = vst [vmem:[%s273] sm:$0xff] %v322
        %vm324 = vcmask 1040384
        %v325 = vsel %vm324, %v300, %v306
        %326 = vst [vmem:[%s281] sm:$0x3] %v325
        %p327 = scmp.lt.s32.totalorder %s20, 1
        %s328 = scalar_select %p327, %s20, 1
        %p329 = scmp.lt.s32.totalorder %s21, 1
        %s330 = scalar_select %p329, %s21, 1
        %s331 = smul.addr %s328, 2
        %s332 = sadd.s32 %s330, %s331
        %s333 = smul.addr %s332, 8
        %s334 = scalar_lea.vmem %s3, %s333
        %p335 = scmp.lt.s32.totalorder %s20, 1
        %s336 = scalar_select %p335, %s20, 1
        %p337 = scmp.lt.s32.totalorder %s21, 1
        %s338 = scalar_select %p337, %s21, 1
        %s339 = smul.addr %s336, 2
        %s340 = sadd.s32 %s338, %s339
        %s341 = smul.addr %s340, 2
        %s342 = scalar_lea.vmem %s4, %s341
        // Predicated region
        $region71: #{glf_forward.3} parent=65 // pred_check
          %p343 = pneg %p118
        $region72: #{glf_forward.3} parent=65 // pred_check_branch
          %345 = sbr.rel (%p343) target = $region74
        $region73: #{glf_forward.3} parent=65 // pred_region
          _
        $region74: #{glf_forward.3} parent=65 // pred_fallthru
          _
        // Predicated region
        $region75: #{glf_forward.3} parent=65 // pred_check
          %p346 = pneg %p146
        $region76: #{glf_forward.3} parent=65 // pred_check_branch
          %348 = sbr.rel (%p346) target = $region78
        $region77: #{glf_forward.3} parent=65 // pred_region
          _
        $region78: #{glf_forward.3} parent=65 // pred_fallthru
          _
      $region66: #{glf_forward.3} parent=5 // pred_fallthru
        _
      %p349 = scmp.le.s32.totalorder 2, %s11
      // Predicated region
      $region79: #{glf_forward.3} parent=5 // pred_check
        %p350 = pneg %p349
      $region80: #{glf_forward.3} parent=5 // pred_check_branch
        %352 = sbr.rel (%p350) target = $region82
      $region81: #{glf_forward.3} parent=5 // pred_region
        %s353 = ssub.s32 %s11, 2
        // Predicated region
        $region83: #{glf_forward.3} parent=81 // pred_check
          %p354 = pneg %p124
        $region84: #{glf_forward.3} parent=81 // pred_check_branch
          %356 = sbr.rel (%p354) target = $region86
        $region85: #{glf_forward.3} parent=81 // pred_region
          %p357 = scmp.lt.s32.totalorder %s22, 1
          %s358 = scalar_select %p357, %s22, 1
          %p359 = scmp.lt.s32.totalorder %s23, 1
          %s360 = scalar_select %p359, %s23, 1
          %s361 = smul.addr %s358, 2
          %s362 = sadd.s32 %s360, %s361
          %s363 = smul.addr %s362, 8
          %s364 = scalar_lea.vmem %s3, %s363
        $region86: #{glf_forward.3} parent=81 // pred_fallthru
          _
        // Predicated region
        $region87: #{glf_forward.3} parent=81 // pred_check
          %p365 = pneg %p152
        $region88: #{glf_forward.3} parent=81 // pred_check_branch
          %367 = sbr.rel (%p365) target = $region90
        $region89: #{glf_forward.3} parent=81 // pred_region
          %p368 = scmp.lt.s32.totalorder %s22, 1
          %s369 = scalar_select %p368, %s22, 1
          %p370 = scmp.lt.s32.totalorder %s23, 1
          %s371 = scalar_select %p370, %s23, 1
          %s372 = smul.addr %s369, 2
          %s373 = sadd.s32 %s371, %s372
          %s374 = smul.addr %s373, 2
          %s375 = scalar_lea.vmem %s4, %s374
        $region90: #{glf_forward.3} parent=81 // pred_fallthru
          _
      $region82: #{glf_forward.3} parent=5 // pred_fallthru
        _
    $region6: #{glf_forward.3} parent=1 // loop_footer
      %s15 = sadd.s32 1, %s11
    $region7: #{glf_forward.3} parent=1 // loop_footer_branch
      %10 = sbr.rel target = $region3
    $region8: #{glf_forward.3} parent=1 // loop_exit
      _

// kernel: reverse.0
$region0: #{reverse.0}
  %s0 = inlined_call_operand.vmem [shape: f32[2,8,16,7], index: 0, kind: input, shape index: {}]
  %s1 = inlined_call_operand.vmem [shape: f32[2,8,16,7], index: 1, kind: output, shape index: {}]
  $region1: #{reverse.0} parent=0
    #allocation0 [shape = 'u8[131072]{0}', space=vmem, size = 0x20000, scoped, tag = 'operand span for operand 0']
    #allocation1 [shape = 'u8[65536]{0}', space=vmem, size = 0x10000, scoped, tag = 'operand span for operand 1']
    %s2 = scalar_lea.vmem [#allocation0], 8
    // Predicated region
    $region2: #{reverse.0} parent=1 // pred_check
      _
    $region3: #{reverse.0} parent=1 // pred_check_branch
      %4 = sbr.rel (0) target = $region5
    $region4: #{reverse.0} parent=1 // pred_region
      // Predicated region
      $region6: #{reverse.0} parent=4 // pred_check
        _
      $region7: #{reverse.0} parent=4 // pred_check_branch
        %6 = sbr.rel (0) target = $region9
      $region8: #{reverse.0} parent=4 // pred_region
        // Predicated region
        $region21: #{reverse.0} parent=8 // pred_check
          _
        $region22: #{reverse.0} parent=8 // pred_check_branch
          %52 = sbr.rel (0) target = $region24
        $region23: #{reverse.0} parent=8 // pred_region
          loop: start=0, step=1, limit=1
          $region25: #{reverse.0} parent=23 // loop_pre_header
            _
          $region26: #{reverse.0} parent=23 // loop_header
            %s54 = sphi 0, %s58
            %p55 = scmp.ge.s32.totalorder %s54, 1
            %s59 = sphi %s0, %s0
            %s60 = sphi %s2, %s2
          $region27: #{reverse.0} parent=23 // loop_header_branch
            %57 = sbr.rel (%p55) target = $region31
          $region28: #{reverse.0} parent=23 // loop_body
            %v61 = vld [vmem:[%s59] sm:$0xff]
            %62 = vst [vmem:[%s60] sm:$0xff] %v61
            %v63 = vld [vmem:[%s59 + $0x8] sm:$0xff]
            %64 = vst [vmem:[%s60 + $0x10] sm:$0xff] %v63
            %v65 = vld [vmem:[%s59 + $0x10] sm:$0xff]
            %66 = vst [vmem:[%s60 + $0x20] sm:$0xff] %v65
            %v67 = vld [vmem:[%s59 + $0x18] sm:$0xff]
            %68 = vst [vmem:[%s60 + $0x30] sm:$0xff] %v67
            %v69 = vld [vmem:[%s59 + $0x20] sm:$0xff]
            %70 = vst [vmem:[%s60 + $0x40] sm:$0xff] %v69
            %v71 = vld [vmem:[%s59 + $0x28] sm:$0xff]
            %72 = vst [vmem:[%s60 + $0x50] sm:$0xff] %v71
            %v73 = vld [vmem:[%s59 + $0x30] sm:$0xff]
            %74 = vst [vmem:[%s60 + $0x60] sm:$0xff] %v73
            %v75 = vld [vmem:[%s59 + $0x38] sm:$0xff]
            %76 = vst [vmem:[%s60 + $0x70] sm:$0xff] %v75
            %v77 = vld [vmem:[%s59 + $0x40] sm:$0xff]
            %78 = vst [vmem:[%s60 + $0x80] sm:$0xff] %v77
            %v79 = vld [vmem:[%s59 + $0x48] sm:$0xff]
            %80 = vst [vmem:[%s60 + $0x90] sm:$0xff] %v79
            %v81 = vld [vmem:[%s59 + $0x50] sm:$0xff]
            %82 = vst [vmem:[%s60 + $0xa0] sm:$0xff] %v81
            %v83 = vld [vmem:[%s59 + $0x58] sm:$0xff]
            %84 = vst [vmem:[%s60 + $0xb0] sm:$0xff] %v83
            %v85 = vld [vmem:[%s59 + $0x60] sm:$0xff]
            %86 = vst [vmem:[%s60 + $0xc0] sm:$0xff] %v85
            %v87 = vld [vmem:[%s59 + $0x68] sm:$0xff]
            %88 = vst [vmem:[%s60 + $0xd0] sm:$0xff] %v87
            %v89 = vld [vmem:[%s59 + $0x70] sm:$0xff]
            %90 = vst [vmem:[%s60 + $0xe0] sm:$0xff] %v89
            %v91 = vld [vmem:[%s59 + $0x78] sm:$0xff]
            %92 = vst [vmem:[%s60 + $0xf0] sm:$0xff] %v91
          $region29: #{reverse.0} parent=23 // loop_footer
            %s58 = sadd.s32 1, %s54
          $region30: #{reverse.0} parent=23 // loop_footer_branch
            %53 = sbr.rel target = $region26
          $region31: #{reverse.0} parent=23 // loop_exit
            _
        $region24: #{reverse.0} parent=8 // pred_fallthru
          _
        // Predicated region
        $region32: #{reverse.0} parent=8 // pred_check
          _
        $region33: #{reverse.0} parent=8 // pred_check_branch
          %94 = sbr.rel target = $region35
        $region34: #{reverse.0} parent=8 // pred_region
          _
        $region35: #{reverse.0} parent=8 // pred_fallthru
          _
      $region9: #{reverse.0} parent=4 // pred_fallthru
        _
      // Predicated region
      $region10: #{reverse.0} parent=4 // pred_check
        _
      $region11: #{reverse.0} parent=4 // pred_check_branch
        %8 = sbr.rel target = $region13
      $region12: #{reverse.0} parent=4 // pred_region
        %s10 = ssub.s32 256, 1
        loop: start=0, step=1, limit=1
        $region14: #{reverse.0} parent=12 // loop_pre_header
          _
        $region15: #{reverse.0} parent=12 // loop_header
          %s12 = sphi 0, %s16
          %p13 = scmp.ge.s32.totalorder %s12, 1
          %s17 = sphi %s0, %s0
          %s18 = sphi %s2, %s2
        $region16: #{reverse.0} parent=12 // loop_header_branch
          %15 = sbr.rel (%p13) target = $region20
        $region17: #{reverse.0} parent=12 // loop_body
          %v19 = vld [vmem:[%s17] sm:%s10]
          %20 = vst [vmem:[%s18] sm:%s10] %v19
          %v21 = vld [vmem:[%s17 + $0x8] sm:%s10]
          %22 = vst [vmem:[%s18 + $0x10] sm:%s10] %v21
          %v23 = vld [vmem:[%s17 + $0x10] sm:%s10]
          %24 = vst [vmem:[%s18 + $0x20] sm:%s10] %v23
          %v25 = vld [vmem:[%s17 + $0x18] sm:%s10]
          %26 = vst [vmem:[%s18 + $0x30] sm:%s10] %v25
          %v27 = vld [vmem:[%s17 + $0x20] sm:%s10]
          %28 = vst [vmem:[%s18 + $0x40] sm:%s10] %v27
          %v29 = vld [vmem:[%s17 + $0x28] sm:%s10]
          %30 = vst [vmem:[%s18 + $0x50] sm:%s10] %v29
          %v31 = vld [vmem:[%s17 + $0x30] sm:%s10]
          %32 = vst [vmem:[%s18 + $0x60] sm:%s10] %v31
          %v33 = vld [vmem:[%s17 + $0x38] sm:%s10]
          %34 = vst [vmem:[%s18 + $0x70] sm:%s10] %v33
          %v35 = vld [vmem:[%s17 + $0x40] sm:%s10]
          %36 = vst [vmem:[%s18 + $0x80] sm:%s10] %v35
          %v37 = vld [vmem:[%s17 + $0x48] sm:%s10]
          %38 = vst [vmem:[%s18 + $0x90] sm:%s10] %v37
          %v39 = vld [vmem:[%s17 + $0x50] sm:%s10]
          %40 = vst [vmem:[%s18 + $0xa0] sm:%s10] %v39
          %v41 = vld [vmem:[%s17 + $0x58] sm:%s10]
          %42 = vst [vmem:[%s18 + $0xb0] sm:%s10] %v41
          %v43 = vld [vmem:[%s17 + $0x60] sm:%s10]
          %44 = vst [vmem:[%s18 + $0xc0] sm:%s10] %v43
          %v45 = vld [vmem:[%s17 + $0x68] sm:%s10]
          %46 = vst [vmem:[%s18 + $0xd0] sm:%s10] %v45
          %v47 = vld [vmem:[%s17 + $0x70] sm:%s10]
          %48 = vst [vmem:[%s18 + $0xe0] sm:%s10] %v47
          %v49 = vld [vmem:[%s17 + $0x78] sm:%s10]
          %50 = vst [vmem:[%s18 + $0xf0] sm:%s10] %v49
        $region18: #{reverse.0} parent=12 // loop_footer
          %s16 = sadd.s32 1, %s12
        $region19: #{reverse.0} parent=12 // loop_footer_branch
          %11 = sbr.rel target = $region15
        $region20: #{reverse.0} parent=12 // loop_exit
          _
      $region13: #{reverse.0} parent=4 // pred_fallthru
        _
    $region5: #{reverse.0} parent=1 // pred_fallthru
      _
    %95 = vnop
    %s96 = scalar_lea.vmem [#allocation0], 7
    %v97 = vld [vmem:[%s96] ss:$-1 sm:$0xff]
    %v98 = vrot.slane %v97, 1
    %99 = vst [vmem:[#allocation1] sm:$0xff] %v98
    %s100 = scalar_lea.vmem [#allocation0], 8
    %s101 = scalar_lea.vmem %s100, 7 [#allocation0]
    %v102 = vld [vmem:[%s101] ss:$-1 sm:$0xff]
    %v103 = vrot.slane %v102, 1
    %v104 = vlaneseq
    %v105 = vshrl.u32 %v104, 7
    %vm106 = vcmp.lt.s32.totalorder %v105, 7
    %107 = vst.msk [vmem:[#allocation1] sm:$0xff] %vm106, %v103
    %s108 = scalar_lea.vmem [#allocation1], 8
    %s109 = scalar_lea.vmem [#allocation0], 16
    %s110 = scalar_lea.vmem %s109, 7 [#allocation0]
    %v111 = vld [vmem:[%s110] ss:$-1 sm:$0xff]
    %v112 = vrot.slane %v111, 1
    %113 = vst [vmem:[%s108] sm:$0xff] %v112
    %s114 = scalar_lea.vmem %s109, 8 [#allocation0]
    %s115 = scalar_lea.vmem %s114, 7 [#allocation0]
    %v116 = vld [vmem:[%s115] ss:$-1 sm:$0xff]
    %v117 = vrot.slane %v116, 1
    %v118 = vlaneseq
    %v119 = vshrl.u32 %v118, 7
    %vm120 = vcmp.lt.s32.totalorder %v119, 7
    %121 = vst.msk [vmem:[%s108] sm:$0xff] %vm120, %v117
    %s122 = scalar_lea.vmem [#allocation1], 16
    %s123 = scalar_lea.vmem [#allocation0], 32
    %s124 = scalar_lea.vmem %s123, 7 [#allocation0]
    %v125 = vld [vmem:[%s124] ss:$-1 sm:$0xff]
    %v126 = vrot.slane %v125, 1
    %127 = vst [vmem:[%s122] sm:$0xff] %v126
    %s128 = scalar_lea.vmem %s123, 8 [#allocation0]
    %s129 = scalar_lea.vmem %s128, 7 [#allocation0]
    %v130 = vld [vmem:[%s129] ss:$-1 sm:$0xff]
    %v131 = vrot.slane %v130, 1
    %v132 = vlaneseq
    %v133 = vshrl.u32 %v132, 7
    %vm134 = vcmp.lt.s32.totalorder %v133, 7
    %135 = vst.msk [vmem:[%s122] sm:$0xff] %vm134, %v131
    %s136 = scalar_lea.vmem [#allocation1], 24
    %s137 = scalar_lea.vmem [#allocation0], 48
    %s138 = scalar_lea.vmem %s137, 7 [#allocation0]
    %v139 = vld [vmem:[%s138] ss:$-1 sm:$0xff]
    %v140 = vrot.slane %v139, 1
    %141 = vst [vmem:[%s136] sm:$0xff] %v140
    %s142 = scalar_lea.vmem %s137, 8 [#allocation0]
    %s143 = scalar_lea.vmem %s142, 7 [#allocation0]
    %v144 = vld [vmem:[%s143] ss:$-1 sm:$0xff]
    %v145 = vrot.slane %v144, 1
    %v146 = vlaneseq
    %v147 = vshrl.u32 %v146, 7
    %vm148 = vcmp.lt.s32.totalorder %v147, 7
    %149 = vst.msk [vmem:[%s136] sm:$0xff] %vm148, %v145
    %s150 = scalar_lea.vmem [#allocation1], 32
    %s151 = scalar_lea.vmem [#allocation0], 64
    %s152 = scalar_lea.vmem %s151, 7 [#allocation0]
    %v153 = vld [vmem:[%s152] ss:$-1 sm:$0xff]
    %v154 = vrot.slane %v153, 1
    %155 = vst [vmem:[%s150] sm:$0xff] %v154
    %s156 = scalar_lea.vmem %s151, 8 [#allocation0]
    %s157 = scalar_lea.vmem %s156, 7 [#allocation0]
    %v158 = vld [vmem:[%s157] ss:$-1 sm:$0xff]
    %v159 = vrot.slane %v158, 1
    %v160 = vlaneseq
    %v161 = vshrl.u32 %v160, 7
    %vm162 = vcmp.lt.s32.totalorder %v161, 7
    %163 = vst.msk [vmem:[%s150] sm:$0xff] %vm162, %v159
    %s164 = scalar_lea.vmem [#allocation1], 40
    %s165 = scalar_lea.vmem [#allocation0], 80
    %s166 = scalar_lea.vmem %s165, 7 [#allocation0]
    %v167 = vld [vmem:[%s166] ss:$-1 sm:$0xff]
    %v168 = vrot.slane %v167, 1
    %169 = vst [vmem:[%s164] sm:$0xff] %v168
    %s170 = scalar_lea.vmem %s165, 8 [#allocation0]
    %s171 = scalar_lea.vmem %s170, 7 [#allocation0]
    %v172 = vld [vmem:[%s171] ss:$-1 sm:$0xff]
    %v173 = vrot.slane %v172, 1
    %v174 = vlaneseq
    %v175 = vshrl.u32 %v174, 7
    %vm176 = vcmp.lt.s32.totalorder %v175, 7
    %177 = vst.msk [vmem:[%s164] sm:$0xff] %vm176, %v173
    %s178 = scalar_lea.vmem [#allocation1], 48
    %s179 = scalar_lea.vmem [#allocation0], 96
    %s180 = scalar_lea.vmem %s179, 7 [#allocation0]
    %v181 = vld [vmem:[%s180] ss:$-1 sm:$0xff]
    %v182 = vrot.slane %v181, 1
    %183 = vst [vmem:[%s178] sm:$0xff] %v182
    %s184 = scalar_lea.vmem %s179, 8 [#allocation0]
    %s185 = scalar_lea.vmem %s184, 7 [#allocation0]
    %v186 = vld [vmem:[%s185] ss:$-1 sm:$0xff]
    %v187 = vrot.slane %v186, 1
    %v188 = vlaneseq
    %v189 = vshrl.u32 %v188, 7
    %vm190 = vcmp.lt.s32.totalorder %v189, 7
    %191 = vst.msk [vmem:[%s178] sm:$0xff] %vm190, %v187
    %s192 = scalar_lea.vmem [#allocation1], 56
    %s193 = scalar_lea.vmem [#allocation0], 112
    %s194 = scalar_lea.vmem %s193, 7 [#allocation0]
    %v195 = vld [vmem:[%s194] ss:$-1 sm:$0xff]
    %v196 = vrot.slane %v195, 1
    %197 = vst [vmem:[%s192] sm:$0xff] %v196
    %s198 = scalar_lea.vmem %s193, 8 [#allocation0]
    %s199 = scalar_lea.vmem %s198, 7 [#allocation0]
    %v200 = vld [vmem:[%s199] ss:$-1 sm:$0xff]
    %v201 = vrot.slane %v200, 1
    %v202 = vlaneseq
    %v203 = vshrl.u32 %v202, 7
    %vm204 = vcmp.lt.s32.totalorder %v203, 7
    %205 = vst.msk [vmem:[%s192] sm:$0xff] %vm204, %v201
    %s206 = scalar_lea.vmem [#allocation1], 64
    %s207 = scalar_lea.vmem [#allocation0], 128
    %s208 = scalar_lea.vmem %s207, 7 [#allocation0]
    %v209 = vld [vmem:[%s208] ss:$-1 sm:$0xff]
    %v210 = vrot.slane %v209, 1
    %211 = vst [vmem:[%s206] sm:$0xff] %v210
    %s212 = scalar_lea.vmem %s207, 8 [#allocation0]
    %s213 = scalar_lea.vmem %s212, 7 [#allocation0]
    %v214 = vld [vmem:[%s213] ss:$-1 sm:$0xff]
    %v215 = vrot.slane %v214, 1
    %v216 = vlaneseq
    %v217 = vshrl.u32 %v216, 7
    %vm218 = vcmp.lt.s32.totalorder %v217, 7
    %219 = vst.msk [vmem:[%s206] sm:$0xff] %vm218, %v215
    %s220 = scalar_lea.vmem [#allocation1], 72
    %s221 = scalar_lea.vmem [#allocation0], 144
    %s222 = scalar_lea.vmem %s221, 7 [#allocation0]
    %v223 = vld [vmem:[%s222] ss:$-1 sm:$0xff]
    %v224 = vrot.slane %v223, 1
    %225 = vst [vmem:[%s220] sm:$0xff] %v224
    %s226 = scalar_lea.vmem %s221, 8 [#allocation0]
    %s227 = scalar_lea.vmem %s226, 7 [#allocation0]
    %v228 = vld [vmem:[%s227] ss:$-1 sm:$0xff]
    %v229 = vrot.slane %v228, 1
    %v230 = vlaneseq
    %v231 = vshrl.u32 %v230, 7
    %vm232 = vcmp.lt.s32.totalorder %v231, 7
    %233 = vst.msk [vmem:[%s220] sm:$0xff] %vm232, %v229
    %s234 = scalar_lea.vmem [#allocation1], 80
    %s235 = scalar_lea.vmem [#allocation0], 160
    %s236 = scalar_lea.vmem %s235, 7 [#allocation0]
    %v237 = vld [vmem:[%s236] ss:$-1 sm:$0xff]
    %v238 = vrot.slane %v237, 1
    %239 = vst [vmem:[%s234] sm:$0xff] %v238
    %s240 = scalar_lea.vmem %s235, 8 [#allocation0]
    %s241 = scalar_lea.vmem %s240, 7 [#allocation0]
    %v242 = vld [vmem:[%s241] ss:$-1 sm:$0xff]
    %v243 = vrot.slane %v242, 1
    %v244 = vlaneseq
    %v245 = vshrl.u32 %v244, 7
    %vm246 = vcmp.lt.s32.totalorder %v245, 7
    %247 = vst.msk [vmem:[%s234] sm:$0xff] %vm246, %v243
    %s248 = scalar_lea.vmem [#allocation1], 88
    %s249 = scalar_lea.vmem [#allocation0], 176
    %s250 = scalar_lea.vmem %s249, 7 [#allocation0]
    %v251 = vld [vmem:[%s250] ss:$-1 sm:$0xff]
    %v252 = vrot.slane %v251, 1
    %253 = vst [vmem:[%s248] sm:$0xff] %v252
    %s254 = scalar_lea.vmem %s249, 8 [#allocation0]
    %s255 = scalar_lea.vmem %s254, 7 [#allocation0]
    %v256 = vld [vmem:[%s255] ss:$-1 sm:$0xff]
    %v257 = vrot.slane %v256, 1
    %v258 = vlaneseq
    %v259 = vshrl.u32 %v258, 7
    %vm260 = vcmp.lt.s32.totalorder %v259, 7
    %261 = vst.msk [vmem:[%s248] sm:$0xff] %vm260, %v257
    %s262 = scalar_lea.vmem [#allocation1], 96
    %s263 = scalar_lea.vmem [#allocation0], 192
    %s264 = scalar_lea.vmem %s263, 7 [#allocation0]
    %v265 = vld [vmem:[%s264] ss:$-1 sm:$0xff]
    %v266 = vrot.slane %v265, 1
    %267 = vst [vmem:[%s262] sm:$0xff] %v266
    %s268 = scalar_lea.vmem %s263, 8 [#allocation0]
    %s269 = scalar_lea.vmem %s268, 7 [#allocation0]
    %v270 = vld [vmem:[%s269] ss:$-1 sm:$0xff]
    %v271 = vrot.slane %v270, 1
    %v272 = vlaneseq
    %v273 = vshrl.u32 %v272, 7
    %vm274 = vcmp.lt.s32.totalorder %v273, 7
    %275 = vst.msk [vmem:[%s262] sm:$0xff] %vm274, %v271
    %s276 = scalar_lea.vmem [#allocation1], 104
    %s277 = scalar_lea.vmem [#allocation0], 208
    %s278 = scalar_lea.vmem %s277, 7 [#allocation0]
    %v279 = vld [vmem:[%s278] ss:$-1 sm:$0xff]
    %v280 = vrot.slane %v279, 1
    %281 = vst [vmem:[%s276] sm:$0xff] %v280
    %s282 = scalar_lea.vmem %s277, 8 [#allocation0]
    %s283 = scalar_lea.vmem %s282, 7 [#allocation0]
    %v284 = vld [vmem:[%s283] ss:$-1 sm:$0xff]
    %v285 = vrot.slane %v284, 1
    %v286 = vlaneseq
    %v287 = vshrl.u32 %v286, 7
    %vm288 = vcmp.lt.s32.totalorder %v287, 7
    %289 = vst.msk [vmem:[%s276] sm:$0xff] %vm288, %v285
    %s290 = scalar_lea.vmem [#allocation1], 112
    %s291 = scalar_lea.vmem [#allocation0], 224
    %s292 = scalar_lea.vmem %s291, 7 [#allocation0]
    %v293 = vld [vmem:[%s292] ss:$-1 sm:$0xff]
    %v294 = vrot.slane %v293, 1
    %295 = vst [vmem:[%s290] sm:$0xff] %v294
    %s296 = scalar_lea.vmem %s291, 8 [#allocation0]
    %s297 = scalar_lea.vmem %s296, 7 [#allocation0]
    %v298 = vld [vmem:[%s297] ss:$-1 sm:$0xff]
    %v299 = vrot.slane %v298, 1
    %v300 = vlaneseq
    %v301 = vshrl.u32 %v300, 7
    %vm302 = vcmp.lt.s32.totalorder %v301, 7
    %303 = vst.msk [vmem:[%s290] sm:$0xff] %vm302, %v299
    %s304 = scalar_lea.vmem [#allocation1], 120
    %s305 = scalar_lea.vmem [#allocation0], 240
    %s306 = scalar_lea.vmem %s305, 7 [#allocation0]
    %v307 = vld [vmem:[%s306] ss:$-1 sm:$0xff]
    %v308 = vrot.slane %v307, 1
    %309 = vst [vmem:[%s304] sm:$0xff] %v308
    %s310 = scalar_lea.vmem %s305, 8 [#allocation0]
    %s311 = scalar_lea.vmem %s310, 7 [#allocation0]
    %v312 = vld [vmem:[%s311] ss:$-1 sm:$0xff]
    %v313 = vrot.slane %v312, 1
    %v314 = vlaneseq
    %v315 = vshrl.u32 %v314, 7
    %vm316 = vcmp.lt.s32.totalorder %v315, 7
    %317 = vst.msk [vmem:[%s304] sm:$0xff] %vm316, %v313
    // Predicated region
    $region36: #{reverse.0} parent=1 // pred_check
      _
    $region37: #{reverse.0} parent=1 // pred_check_branch
      %319 = sbr.rel (0) target = $region39
    $region38: #{reverse.0} parent=1 // pred_region
      // Predicated region
      $region40: #{reverse.0} parent=38 // pred_check
        _
      $region41: #{reverse.0} parent=38 // pred_check_branch
        %321 = sbr.rel (0) target = $region43
      $region42: #{reverse.0} parent=38 // pred_region
        // Predicated region
        $region55: #{reverse.0} parent=42 // pred_check
          _
        $region56: #{reverse.0} parent=42 // pred_check_branch
          %367 = sbr.rel (0) target = $region58
        $region57: #{reverse.0} parent=42 // pred_region
          loop: start=0, step=1, limit=1
          $region59: #{reverse.0} parent=57 // loop_pre_header
            _
          $region60: #{reverse.0} parent=57 // loop_header
            %s369 = sphi 0, %s373
            %p370 = scmp.ge.s32.totalorder %s369, 1
            %s374 = sphi [#allocation1], [#allocation1]
            %s375 = sphi %s1, %s1
          $region61: #{reverse.0} parent=57 // loop_header_branch
            %372 = sbr.rel (%p370) target = $region65
          $region62: #{reverse.0} parent=57 // loop_body
            %v376 = vld [vmem:[%s374] sm:$0xff]
            %377 = vst [vmem:[%s375] sm:$0xff] %v376
            %v378 = vld [vmem:[%s374 + $0x8] sm:$0xff]
            %379 = vst [vmem:[%s375 + $0x8] sm:$0xff] %v378
            %v380 = vld [vmem:[%s374 + $0x10] sm:$0xff]
            %381 = vst [vmem:[%s375 + $0x10] sm:$0xff] %v380
            %v382 = vld [vmem:[%s374 + $0x18] sm:$0xff]
            %383 = vst [vmem:[%s375 + $0x18] sm:$0xff] %v382
            %v384 = vld [vmem:[%s374 + $0x20] sm:$0xff]
            %385 = vst [vmem:[%s375 + $0x20] sm:$0xff] %v384
            %v386 = vld [vmem:[%s374 + $0x28] sm:$0xff]
            %387 = vst [vmem:[%s375 + $0x28] sm:$0xff] %v386
            %v388 = vld [vmem:[%s374 + $0x30] sm:$0xff]
            %389 = vst [vmem:[%s375 + $0x30] sm:$0xff] %v388
            %v390 = vld [vmem:[%s374 + $0x38] sm:$0xff]
            %391 = vst [vmem:[%s375 + $0x38] sm:$0xff] %v390
            %v392 = vld [vmem:[%s374 + $0x40] sm:$0xff]
            %393 = vst [vmem:[%s375 + $0x40] sm:$0xff] %v392
            %v394 = vld [vmem:[%s374 + $0x48] sm:$0xff]
            %395 = vst [vmem:[%s375 + $0x48] sm:$0xff] %v394
            %v396 = vld [vmem:[%s374 + $0x50] sm:$0xff]
            %397 = vst [vmem:[%s375 + $0x50] sm:$0xff] %v396
            %v398 = vld [vmem:[%s374 + $0x58] sm:$0xff]
            %399 = vst [vmem:[%s375 + $0x58] sm:$0xff] %v398
            %v400 = vld [vmem:[%s374 + $0x60] sm:$0xff]
            %401 = vst [vmem:[%s375 + $0x60] sm:$0xff] %v400
            %v402 = vld [vmem:[%s374 + $0x68] sm:$0xff]
            %403 = vst [vmem:[%s375 + $0x68] sm:$0xff] %v402
            %v404 = vld [vmem:[%s374 + $0x70] sm:$0xff]
            %405 = vst [vmem:[%s375 + $0x70] sm:$0xff] %v404
            %v406 = vld [vmem:[%s374 + $0x78] sm:$0xff]
            %407 = vst [vmem:[%s375 + $0x78] sm:$0xff] %v406
          $region63: #{reverse.0} parent=57 // loop_footer
            %s373 = sadd.s32 1, %s369
          $region64: #{reverse.0} parent=57 // loop_footer_branch
            %368 = sbr.rel target = $region60
          $region65: #{reverse.0} parent=57 // loop_exit
            _
        $region58: #{reverse.0} parent=42 // pred_fallthru
          _
        // Predicated region
        $region66: #{reverse.0} parent=42 // pred_check
          _
        $region67: #{reverse.0} parent=42 // pred_check_branch
          %409 = sbr.rel target = $region69
        $region68: #{reverse.0} parent=42 // pred_region
          _
        $region69: #{reverse.0} parent=42 // pred_fallthru
          _
      $region43: #{reverse.0} parent=38 // pred_fallthru
        _
      // Predicated region
      $region44: #{reverse.0} parent=38 // pred_check
        _
      $region45: #{reverse.0} parent=38 // pred_check_branch
        %323 = sbr.rel target = $region47
      $region46: #{reverse.0} parent=38 // pred_region
        %s325 = ssub.s32 256, 1
        loop: start=0, step=1, limit=1
        $region48: #{reverse.0} parent=46 // loop_pre_header
          _
        $region49: #{reverse.0} parent=46 // loop_header
          %s327 = sphi 0, %s331
          %p328 = scmp.ge.s32.totalorder %s327, 1
          %s332 = sphi [#allocation1], [#allocation1]
          %s333 = sphi %s1, %s1
        $region50: #{reverse.0} parent=46 // loop_header_branch
          %330 = sbr.rel (%p328) target = $region54
        $region51: #{reverse.0} parent=46 // loop_body
          %v334 = vld [vmem:[%s332] sm:%s325]
          %335 = vst [vmem:[%s333] sm:%s325] %v334
          %v336 = vld [vmem:[%s332 + $0x8] sm:%s325]
          %337 = vst [vmem:[%s333 + $0x8] sm:%s325] %v336
          %v338 = vld [vmem:[%s332 + $0x10] sm:%s325]
          %339 = vst [vmem:[%s333 + $0x10] sm:%s325] %v338
          %v340 = vld [vmem:[%s332 + $0x18] sm:%s325]
          %341 = vst [vmem:[%s333 + $0x18] sm:%s325] %v340
          %v342 = vld [vmem:[%s332 + $0x20] sm:%s325]
          %343 = vst [vmem:[%s333 + $0x20] sm:%s325] %v342
          %v344 = vld [vmem:[%s332 + $0x28] sm:%s325]
          %345 = vst [vmem:[%s333 + $0x28] sm:%s325] %v344
          %v346 = vld [vmem:[%s332 + $0x30] sm:%s325]
          %347 = vst [vmem:[%s333 + $0x30] sm:%s325] %v346
          %v348 = vld [vmem:[%s332 + $0x38] sm:%s325]
          %349 = vst [vmem:[%s333 + $0x38] sm:%s325] %v348
          %v350 = vld [vmem:[%s332 + $0x40] sm:%s325]
          %351 = vst [vmem:[%s333 + $0x40] sm:%s325] %v350
          %v352 = vld [vmem:[%s332 + $0x48] sm:%s325]
          %353 = vst [vmem:[%s333 + $0x48] sm:%s325] %v352
          %v354 = vld [vmem:[%s332 + $0x50] sm:%s325]
          %355 = vst [vmem:[%s333 + $0x50] sm:%s325] %v354
          %v356 = vld [vmem:[%s332 + $0x58] sm:%s325]
          %357 = vst [vmem:[%s333 + $0x58] sm:%s325] %v356
          %v358 = vld [vmem:[%s332 + $0x60] sm:%s325]
          %359 = vst [vmem:[%s333 + $0x60] sm:%s325] %v358
          %v360 = vld [vmem:[%s332 + $0x68] sm:%s325]
          %361 = vst [vmem:[%s333 + $0x68] sm:%s325] %v360
          %v362 = vld [vmem:[%s332 + $0x70] sm:%s325]
          %363 = vst [vmem:[%s333 + $0x70] sm:%s325] %v362
          %v364 = vld [vmem:[%s332 + $0x78] sm:%s325]
          %365 = vst [vmem:[%s333 + $0x78] sm:%s325] %v364
        $region52: #{reverse.0} parent=46 // loop_footer
          %s331 = sadd.s32 1, %s327
        $region53: #{reverse.0} parent=46 // loop_footer_branch
          %326 = sbr.rel target = $region49
        $region54: #{reverse.0} parent=46 // loop_exit
          _
      $region47: #{reverse.0} parent=38 // pred_fallthru
        _
    $region39: #{reverse.0} parent=1 // pred_fallthru
      _
    %410 = vnop

// kernel: glf_forward.4
$region0: #{glf_forward.4}
  #allocation0 [shape = 'u32[]', space=smem, size = 0x4, offset = 0x4, fixed_abs, tag = 'smem constant byte address 0x4 - core index']
  #allocation1 [shape = 'u32[144,128]{1,0:T(1,128)}', space=vmem, size = 0x12000, scoped, tag = 'internal scratch']
  %s0 = inlined_call_operand.vmem [shape: f32[2,16,256], index: 0, kind: input, shape index: {}]
  %s1 = inlined_call_operand.vmem [shape: f32[2,2,256], index: 1, kind: input, shape index: {}]
  %s2 = inlined_call_operand.vmem [shape: f32[8,1], index: 2, kind: input, shape index: {}]
  %s3 = inlined_call_operand.vmem [shape: f32[8,1], index: 3, kind: input, shape index: {}]
  %s4 = inlined_call_operand.vmem [shape: f32[8,9], index: 4, kind: input, shape index: {}]
  %s5 = inlined_call_operand.vmem [shape: f32[2,256], index: 5, kind: input, shape index: {}]
  %s6 = inlined_call_operand.vmem [shape: f32[2,8,256], index: 6, kind: output, shape index: {}]
  %s7 = sld [smem:[#allocation0]]
  $region57: #{glf_forward.4} parent=0
    _
  %s9 = ssub.s32 1, %s7
  %s10 = scalar_select 0, %s9, %s7
  loop: start=0, step=1, limit=4
  $region2: #{glf_forward.4} parent=0 // loop_pre_header
    _
  $region3: #{glf_forward.4} parent=0 // loop_header
    %s12 = sphi 0, %s16
    %p13 = scmp.ge.s32.totalorder %s12, 4
    %s19 = sphi 0, %s31
    %s20 = sphi 0, %s27
    %s21 = sphi 0, %s19
    %s22 = sphi 0, %s20
    %s23 = sphi 0, %s21
    %s24 = sphi 0, %s22
    %s36 = sphi 0, %s38
    %s39 = sphi 0, %s36
    %s40 = sphi 0, %s39
    %s56 = sphi 0, %s40
    %s62 = sphi 0, %s64
    %s65 = sphi 0, %s62
    %s66 = sphi 0, %s65
    %s82 = sphi 0, %s66
    %s88 = sphi 0, %s90
    %s91 = sphi 0, %s88
    %s92 = sphi 0, %s91
    %s108 = sphi 0, %s92
    %s114 = sphi 0, %s116
    %s117 = sphi 0, %s114
    %s118 = sphi 0, %s117
    %s134 = sphi 0, %s118
    %s140 = sphi 0, %s142
    %s143 = sphi 0, %s140
    %s144 = sphi 0, %s143
    %s160 = sphi 0, %s144
    %s164 = sphi 0, %s164
    %s166 = sphi 0, %s164
    %s167 = sphi 0, %s166
    %s181 = sphi 0, %s167
    %s189 = sphi 0, %s191
    %s192 = sphi 0, %s189
    %s193 = sphi 0, %s192
    %s209 = sphi 0, %s193
  $region4: #{glf_forward.4} parent=0 // loop_header_branch
    %15 = sbr.rel (%p13) target = $region8
  $region5: #{glf_forward.4} parent=0 // loop_body
    %s17 = ssub.s32 %s12, 1
    %s18 = ssub.s32 %s12, 2
    %s25 = sadd.s32 1, %s20
    %p26 = scmp.ge.s32.totalorder %s25, 1
    %s27 = scalar_select %p26, 0, %s25
    %s28 = sadd.s32 1, %s19
    %s29 = scalar_select %p26, %s28, %s19
    %p30 = scmp.ge.s32.totalorder %s29, 2
    %s31 = scalar_select %p30, 0, %s29
    %s32 = ssub.s32 %s19, %s31
    %s33 = ssub.s32 %s20, %s27
    %s34 = sor.u32 %s32, %s33
    %p35 = scmp.eq.s32.totalorder %s34, 0
    %s37 = sadd.s32 %s36, 1
    %s38 = scalar_select %p35, %s36, %s37
    %p41 = pneg %p35
    %p42 = scmp.eq.s32.totalorder %s12, 1
    %p43 = por %p41, %p42
    %p44 = scmp.ne.s32.totalorder %s36, %s39
    %p45 = scmp.eq.s32.totalorder %s12, 0
    %p46 = por %p44, %p45
    %p47 = scmp.ne.s32.totalorder %s36, %s39
    %p48 = scmp.eq.s32.totalorder %s17, 1
    %p49 = por %p47, %p48
    %p50 = scmp.ne.s32.totalorder %s39, %s40
    %p51 = scmp.eq.s32.totalorder %s17, 0
    %p52 = por %p50, %p51
    %p53 = scmp.ne.s32.totalorder %s39, %s40
    %p54 = scmp.eq.s32.totalorder %s18, 1
    %p55 = por %p53, %p54
    %p57 = scmp.ne.s32.totalorder %s40, %s56
    %p58 = scmp.eq.s32.totalorder %s18, 0
    %p59 = por %p57, %p58
    %s60 = ssub.s32 %s19, %s31
    %p61 = scmp.eq.s32.totalorder %s60, 0
    %s63 = sadd.s32 %s62, 1
    %s64 = scalar_select %p61, %s62, %s63
    %p67 = pneg %p61
    %p68 = scmp.eq.s32.totalorder %s12, 1
    %p69 = por %p67, %p68
    %p70 = scmp.ne.s32.totalorder %s62, %s65
    %p71 = scmp.eq.s32.totalorder %s12, 0
    %p72 = por %p70, %p71
    %p73 = scmp.ne.s32.totalorder %s62, %s65
    %p74 = scmp.eq.s32.totalorder %s17, 1
    %p75 = por %p73, %p74
    %p76 = scmp.ne.s32.totalorder %s65, %s66
    %p77 = scmp.eq.s32.totalorder %s17, 0
    %p78 = por %p76, %p77
    %p79 = scmp.ne.s32.totalorder %s65, %s66
    %p80 = scmp.eq.s32.totalorder %s18, 1
    %p81 = por %p79, %p80
    %p83 = scmp.ne.s32.totalorder %s66, %s82
    %p84 = scmp.eq.s32.totalorder %s18, 0
    %p85 = por %p83, %p84
    %s86 = ssub.s32 %s20, %s27
    %p87 = scmp.eq.s32.totalorder %s86, 0
    %s89 = sadd.s32 %s88, 1
    %s90 = scalar_select %p87, %s88, %s89
    %p93 = pneg %p87
    %p94 = scmp.eq.s32.totalorder %s12, 1
    %p95 = por %p93, %p94
    %p96 = scmp.ne.s32.totalorder %s88, %s91
    %p97 = scmp.eq.s32.totalorder %s12, 0
    %p98 = por %p96, %p97
    %p99 = scmp.ne.s32.totalorder %s88, %s91
    %p100 = scmp.eq.s32.totalorder %s17, 1
    %p101 = por %p99, %p100
    %p102 = scmp.ne.s32.totalorder %s91, %s92
    %p103 = scmp.eq.s32.totalorder %s17, 0
    %p104 = por %p102, %p103
    %p105 = scmp.ne.s32.totalorder %s91, %s92
    %p106 = scmp.eq.s32.totalorder %s18, 1
    %p107 = por %p105, %p106
    %p109 = scmp.ne.s32.totalorder %s92, %s108
    %p110 = scmp.eq.s32.totalorder %s18, 0
    %p111 = por %p109, %p110
    %s112 = ssub.s32 %s20, %s27
    %p113 = scmp.eq.s32.totalorder %s112, 0
    %s115 = sadd.s32 %s114, 1
    %s116 = scalar_select %p113, %s114, %s115
    %p119 = pneg %p113
    %p120 = scmp.eq.s32.totalorder %s12, 1
    %p121 = por %p119, %p120
    %p122 = scmp.ne.s32.totalorder %s114, %s117
    %p123 = scmp.eq.s32.totalorder %s12, 0
    %p124 = por %p122, %p123
    %p125 = scmp.ne.s32.totalorder %s114, %s117
    %p126 = scmp.eq.s32.totalorder %s17, 1
    %p127 = por %p125, %p126
    %p128 = scmp.ne.s32.totalorder %s117, %s118
    %p129 = scmp.eq.s32.totalorder %s17, 0
    %p130 = por %p128, %p129
    %p131 = scmp.ne.s32.totalorder %s117, %s118
    %p132 = scmp.eq.s32.totalorder %s18, 1
    %p133 = por %p131, %p132
    %p135 = scmp.ne.s32.totalorder %s118, %s134
    %p136 = scmp.eq.s32.totalorder %s18, 0
    %p137 = por %p135, %p136
    %s138 = ssub.s32 %s20, %s27
    %p139 = scmp.eq.s32.totalorder %s138, 0
    %s141 = sadd.s32 %s140, 1
    %s142 = scalar_select %p139, %s140, %s141
    %p145 = pneg %p139
    %p146 = scmp.eq.s32.totalorder %s12, 1
    %p147 = por %p145, %p146
    %p148 = scmp.ne.s32.totalorder %s140, %s143
    %p149 = scmp.eq.s32.totalorder %s12, 0
    %p150 = por %p148, %p149
    %p151 = scmp.ne.s32.totalorder %s140, %s143
    %p152 = scmp.eq.s32.totalorder %s17, 1
    %p153 = por %p151, %p152
    %p154 = scmp.ne.s32.totalorder %s143, %s144
    %p155 = scmp.eq.s32.totalorder %s17, 0
    %p156 = por %p154, %p155
    %p157 = scmp.ne.s32.totalorder %s143, %s144
    %p158 = scmp.eq.s32.totalorder %s18, 1
    %p159 = por %p157, %p158
    %p161 = scmp.ne.s32.totalorder %s144, %s160
    %p162 = scmp.eq.s32.totalorder %s18, 0
    %p163 = por %p161, %p162
    %s165 = sadd.s32 %s164, 1
    %p168 = scmp.eq.s32.totalorder %s12, 1
    %p169 = scmp.ne.s32.totalorder %s164, %s166
    %p170 = scmp.eq.s32.totalorder %s12, 0
    %p171 = por %p169, %p170
    %p172 = scmp.ne.s32.totalorder %s164, %s166
    %p173 = scmp.eq.s32.totalorder %s17, 1
    %p174 = por %p172, %p173
    %p175 = scmp.ne.s32.totalorder %s166, %s167
    %p176 = scmp.eq.s32.totalorder %s17, 0
    %p177 = por %p175, %p176
    %p178 = scmp.ne.s32.totalorder %s166, %s167
    %p179 = scmp.eq.s32.totalorder %s18, 1
    %p180 = por %p178, %p179
    %p182 = scmp.ne.s32.totalorder %s167, %s181
    %p183 = scmp.eq.s32.totalorder %s18, 0
    %p184 = por %p182, %p183
    %s185 = ssub.s32 %s19, %s31
    %s186 = ssub.s32 %s20, %s27
    %s187 = sor.u32 %s185, %s186
    %p188 = scmp.eq.s32.totalorder %s187, 0
    %s190 = sadd.s32 %s189, 1
    %s191 = scalar_select %p188, %s189, %s190
    %p194 = pneg %p188
    %p195 = scmp.eq.s32.totalorder %s12, 1
    %p196 = por %p194, %p195
    %p197 = scmp.ne.s32.totalorder %s189, %s192
    %p198 = scmp.eq.s32.totalorder %s12, 0
    %p199 = por %p197, %p198
    %p200 = scmp.ne.s32.totalorder %s189, %s192
    %p201 = scmp.eq.s32.totalorder %s17, 1
    %p202 = por %p200, %p201
    %p203 = scmp.ne.s32.totalorder %s192, %s193
    %p204 = scmp.eq.s32.totalorder %s17, 0
    %p205 = por %p203, %p204
    %p206 = scmp.ne.s32.totalorder %s192, %s193
    %p207 = scmp.eq.s32.totalorder %s18, 1
    %p208 = por %p206, %p207
    %p210 = scmp.ne.s32.totalorder %s193, %s209
    %p211 = scmp.eq.s32.totalorder %s18, 0
    %p212 = por %p210, %p211
    %p213 = scmp.le.s32.totalorder 1, %s12
    %p214 = scmp.lt.s32.totalorder %s12, 3
    %p215 = pnand %p213, %p214
    %p216 = pneg %p215
    // Predicated region
    $region9: #{glf_forward.4} parent=5 // pred_check
      _
    $region10: #{glf_forward.4} parent=5 // pred_check_branch
      %218 = sbr.rel (%p215) target = $region12
    $region11: #{glf_forward.4} parent=5 // pred_region
      %s219 = ssub.s32 %s12, 1
      // Predicated region
      $region13: #{glf_forward.4} parent=11 // pred_check
        %p220 = pneg %p104
      $region14: #{glf_forward.4} parent=11 // pred_check_branch
        %222 = sbr.rel (%p220) target = $region16
      $region15: #{glf_forward.4} parent=11 // pred_region
        %p223 = scmp.lt.s32.totalorder %s22, 0
        %s224 = scalar_select %p223, %s22, 0
        %s225 = smul.addr %s224, 8
        %s226 = scalar_lea.vmem %s2, %s225
      $region16: #{glf_forward.4} parent=11 // pred_fallthru
        _
      // Predicated region
      $region17: #{glf_forward.4} parent=11 // pred_check
        %p227 = pneg %p130
      $region18: #{glf_forward.4} parent=11 // pred_check_branch
        %229 = sbr.rel (%p227) target = $region20
      $region19: #{glf_forward.4} parent=11 // pred_region
        %p230 = scmp.lt.s32.totalorder %s22, 0
        %s231 = scalar_select %p230, %s22, 0
        %s232 = smul.addr %s231, 8
        %s233 = scalar_lea.vmem %s3, %s232
      $region20: #{glf_forward.4} parent=11 // pred_fallthru
        _
      // Predicated region
      $region21: #{glf_forward.4} parent=11 // pred_check
        %p234 = pneg %p156
      $region22: #{glf_forward.4} parent=11 // pred_check_branch
        %236 = sbr.rel (%p234) target = $region24
      $region23: #{glf_forward.4} parent=11 // pred_region
        %p237 = scmp.lt.s32.totalorder %s22, 0
        %s238 = scalar_select %p237, %s22, 0
        %s239 = smul.addr %s238, 8
        %s240 = scalar_lea.vmem %s4, %s239
      $region24: #{glf_forward.4} parent=11 // pred_fallthru
        _
      // Predicated region
      $region25: #{glf_forward.4} parent=11 // pred_check
        %p241 = pneg %p177
      $region26: #{glf_forward.4} parent=11 // pred_check_branch
        %243 = sbr.rel (%p241) target = $region28
      $region27: #{glf_forward.4} parent=11 // pred_region
        _
      $region28: #{glf_forward.4} parent=11 // pred_fallthru
        _
    $region12: #{glf_forward.4} parent=5 // pred_fallthru
      _
    %p244 = scmp.lt.s32.totalorder %s12, 2
    // Predicated region
    $region29: #{glf_forward.4} parent=5 // pred_check
      %p245 = pneg %p244
    $region30: #{glf_forward.4} parent=5 // pred_check_branch
      %247 = sbr.rel (%p245) target = $region32
    $region31: #{glf_forward.4} parent=5 // pred_region
      // Predicated region
      $region33: #{glf_forward.4} parent=31 // pred_check
        %p248 = pneg %p46
      $region34: #{glf_forward.4} parent=31 // pred_check_branch
        %250 = sbr.rel (%p248) target = $region36
      $region35: #{glf_forward.4} parent=31 // pred_region
        %p251 = scmp.lt.s32.totalorder %s19, 1
        %s252 = scalar_select %p251, %s19, 1
        %p253 = scmp.lt.s32.totalorder %s20, 1
        %s254 = scalar_select %p253, %s20, 1
        %s255 = smul.addr %s254, 2
        %s256 = smul.addr %s252, 4
        %s257 = sadd.s32 %s255, %s256
        %s258 = smul.addr %s257, 8
        %s259 = scalar_lea.vmem %s0, %s258
      $region36: #{glf_forward.4} parent=31 // pred_fallthru
        _
      // Predicated region
      $region37: #{glf_forward.4} parent=31 // pred_check
        %p260 = pneg %p72
      $region38: #{glf_forward.4} parent=31 // pred_check_branch
        %262 = sbr.rel (%p260) target = $region40
      $region39: #{glf_forward.4} parent=31 // pred_region
        %p263 = scmp.lt.s32.totalorder %s19, 1
        %s264 = scalar_select %p263, %s19, 1
        %s265 = smul.addr %s264, 2
        %s266 = smul.addr %s265, 2
        %s267 = scalar_lea.vmem %s1, %s266
      $region40: #{glf_forward.4} parent=31 // pred_fallthru
        _
    $region32: #{glf_forward.4} parent=5 // pred_fallthru
      _
    %p268 = scmp.le.s32.totalorder 1, %s12
    %p269 = scmp.lt.s32.totalorder %s12, 3
    %p270 = pnand %p268, %p269
    %p271 = pneg %p270
    // Predicated region
    $region41: #{glf_forward.4} parent=5 // pred_check
      _
    $region42: #{glf_forward.4} parent=5 // pred_check_branch
      %273 = sbr.rel (%p270) target = $region44
    $region43: #{glf_forward.4} parent=5 // pred_region
      %s274 = ssub.s32 %s12, 1
      %p275 = scmp.lt.s32.totalorder %s21, 1
      %s276 = scalar_select %p275, %s21, 1
      %p277 = scmp.lt.s32.totalorder %s22, 1
      %s278 = scalar_select %p277, %s22, 1
      %s279 = smul.addr %s278, 2
      %s280 = smul.addr %s276, 4
      %s281 = sadd.s32 %s279, %s280
      %s282 = smul.addr %s281, 8
      %s283 = scalar_lea.vmem %s0, %s282
      %p284 = pneg %p52
      %p285 = pneg %p49
      %p286 = scmp.lt.s32.totalorder %s21, 1
      %s287 = scalar_select %p286, %s21, 1
      %s288 = smul.addr %s287, 2
      %s289 = smul.addr %s288, 2
      %s290 = scalar_lea.vmem %s1, %s289
      %p291 = pneg %p78
      %p292 = pneg %p75
      %p293 = scmp.lt.s32.totalorder %s22, 0
      %s294 = scalar_select %p293, %s22, 0
      %s295 = smul.addr %s294, 8
      %s296 = scalar_lea.vmem %s2, %s295
      %p297 = pneg %p104
      %p298 = pneg %p101
      %p299 = scmp.lt.s32.totalorder %s22, 0
      %s300 = scalar_select %p299, %s22, 0
      %s301 = smul.addr %s300, 8
      %s302 = scalar_lea.vmem %s3, %s301
      %p303 = pneg %p130
      %p304 = pneg %p127
      %p305 = scmp.lt.s32.totalorder %s22, 0
      %s306 = scalar_select %p305, %s22, 0
      %s307 = smul.addr %s306, 8
      %s308 = scalar_lea.vmem %s4, %s307
      %p309 = pneg %p156
      %p310 = pneg %p153
      %p311 = pneg %p177
      %p312 = pneg %p174
      %p313 = pneg %p205
      %p314 = pneg %p202
      %p315 = scmp.lt.s32.totalorder %s21, 1
      %s316 = scalar_select %p315, %s21, 1
      %p317 = scmp.lt.s32.totalorder %s22, 0
      %s318 = scalar_select %p317, %s22, 0
      %s319 = smul.addr %s318, 2
      %s320 = smul.addr %s316, 2
      %s321 = sadd.s32 %s319, %s320
      %s322 = smul.addr %s321, 8
      %s323 = scalar_lea.vmem %s6, %s322
      %p324 = scmp.lt.s32.totalorder %s21, 1
      %s325 = scalar_select %p324, %s21, 1
      %p326 = scmp.lt.s32.totalorder %s22, 1
      %s327 = scalar_select %p326, %s22, 1
      %s328 = smul.addr %s327, 2
      %s329 = smul.addr %s325, 4
      %s330 = sadd.s32 %s328, %s329
      %s331 = smul.addr %s330, 8
      %s332 = scalar_lea.vmem %s0, %s331
      %p333 = scmp.lt.s32.totalorder %s21, 1
      %s334 = scalar_select %p333, %s21, 1
      %s335 = smul.addr %s334, 2
      %s336 = smul.addr %s335, 2
      %s337 = scalar_lea.vmem %s1, %s336
      %p338 = scmp.lt.s32.totalorder %s22, 0
      %s339 = scalar_select %p338, %s22, 0
      %s340 = smul.addr %s339, 8
      %s341 = scalar_lea.vmem %s2, %s340
      %p342 = scmp.lt.s32.totalorder %s22, 0
      %s343 = scalar_select %p342, %s22, 0
      %s344 = smul.addr %s343, 8
      %s345 = scalar_lea.vmem %s3, %s344
      %p346 = scmp.lt.s32.totalorder %s22, 0
      %s347 = scalar_select %p346, %s22, 0
      %s348 = smul.addr %s347, 8
      %s349 = scalar_lea.vmem %s4, %s348
      %p350 = scmp.lt.s32.totalorder %s21, 1
      %s351 = scalar_select %p350, %s21, 1
      %p352 = scmp.lt.s32.totalorder %s22, 0
      %s353 = scalar_select %p352, %s22, 0
      %s354 = smul.addr %s353, 2
      %s355 = smul.addr %s351, 2
      %s356 = sadd.s32 %s354, %s355
      %s357 = smul.addr %s356, 8
      %s358 = scalar_lea.vmem %s6, %s357
      %v359 = vld [vmem:[%s332] sm:$0xff]
      %v360 = vld [vmem:[%s332 + $0x8] sm:$0xff]
      %v361 = vld [vmem:[%s337] ss:$2 sm:$0x3]
      %s362 = scalar_lea.vmem %s337, 1
      %v363 = vld [vmem:[%s362] ss:$2 sm:$0x3]
      %v365 = vlaneseq
      %v366 = vshrl.u32 %v365, 7
      %v367 = vsub.s32 0, %v366
      %v368 = vrot.slane %v361, %v367
      %v369 = vlaneseq
      %v370 = vshrl.u32 %v369, 7
      %v371 = vsub.s32 1, %v370
      %v372 = vrot.slane %v361, %v371
      %v375 = vsub.f32 %v359, %v368
      %v376 = vsub.f32 %v360, %v372
      %v378 = vlaneseq
      %v379 = vshrl.u32 %v378, 7
      %v380 = vsub.s32 0, %v379
      %v381 = vrot.slane %v363, %v380
      %v382 = vlaneseq
      %v383 = vshrl.u32 %v382, 7
      %v384 = vsub.s32 1, %v383
      %v385 = vrot.slane %v363, %v384
      %v388 = vmul.f32 %v375, %v381
      %v389 = vmul.f32 %v376, %v385
      %v390 = vld [vmem:[%s341] sm:$0xff]
      %392 = vset.pattern.permute.xlu0 0
      %393 = vperm.xlu0 %392, %v390
      %v394 = vpop.permute.xlu0 %393
      %v396 = vmul.f32 %v388, %v394
      %v397 = vmul.f32 %v389, %v394
      %v398 = vld [vmem:[%s345] sm:$0xff]
      %400 = vset.pattern.permute.xlu0 0
      %401 = vperm.xlu0 %400, %v398
      %v402 = vpop.permute.xlu0 %401
      %v404 = vadd.f32 %v396, %v402
      %v405 = vadd.f32 %v397, %v402
      %v406 = vld [vmem:[%s349] sm:$0xff]
      %v407 = vld [vmem:[%s5] ss:$2 sm:$0x3]
      %v409 = vlaneseq
      %v410 = vshrl.u32 %v409, 7
      %v411 = vsub.s32 0, %v410
      %v412 = vrot.slane %v407, %v411
      %v413 = vlaneseq
      %v414 = vshrl.u32 %v413, 7
      %v415 = vsub.s32 1, %v414
      %v416 = vrot.slane %v407, %v415
      %v419 = vmul.f32 %v404, %v412
      %v420 = vmul.f32 %v405, %v416
      %s421 = scalar_lea.vmem %s5, 1
      %v422 = vld [vmem:[%s421] ss:$2 sm:$0x3]
      %v424 = vlaneseq
      %v425 = vshrl.u32 %v424, 7
      %v426 = vsub.s32 0, %v425
      %v427 = vrot.slane %v422, %v426
      %v428 = vlaneseq
      %v429 = vshrl.u32 %v428, 7
      %v430 = vsub.s32 1, %v429
      %v431 = vrot.slane %v422, %v430
      %v434 = vmul.f32 %v404, %v427
      %v435 = vmul.f32 %v405, %v431
      %v436 = vlaneseq
      %v437 = vand.u32 %v436, 127
      %v438 = vadd.s32 %v437, 128
      %439 = vrot.lane.b32.xlu0 %v419, 1
      %v440 = vpop.permute.xlu0 %439
      %441 = vrot.lane.b32.xlu0 %v420, 1
      %v442 = vpop.permute.xlu0 %441
      %vm443 = vcmp.lt.s32.totalorder %v437, 1
      %v444 = vsel %vm443, %v440, %v442
      %v445 = vsel %vm443, %v442, %v440
      %446 = vrot.lane.b32.xlu0 %v434, 127
      %v447 = vpop.permute.xlu0 %446
      %448 = vrot.lane.b32.xlu0 %v435, 127
      %v449 = vpop.permute.xlu0 %448
      %vm450 = vcmp.lt.s32.totalorder %v437, 127
      %v451 = vsel %vm450, %v447, %v449
      %v452 = vsel %vm450, %v449, %v447
      %454 = vset.pattern.permute.xlu0 3
      %455 = vperm.xlu0 %454, %v406
      %v456 = vpop.permute.xlu0 %455
      %v458 = vmul.f32 %v445, %v456
      %v459 = vmul.f32 %v444, %v456
      %460 = vset.pattern.permute.xlu0 4
      %461 = vperm.xlu0 %460, %v406
      %v462 = vpop.permute.xlu0 %461
      %v464 = vmul.f32 %v404, %v462
      %v465 = vmul.f32 %v405, %v462
      %v466 = vadd.f32 %v458, %v464
      %v467 = vadd.f32 %v459, %v465
      %468 = vset.pattern.permute.xlu0 5
      %469 = vperm.xlu0 %468, %v406
      %v470 = vpop.permute.xlu0 %469
      %v472 = vmul.f32 %v451, %v470
      %v473 = vmul.f32 %v452, %v470
      %v474 = vadd.f32 %v466, %v472
      %v475 = vadd.f32 %v467, %v473
      %vm476 = vcmp.ge.s32.totalorder %v437, 16
      %vm477 = vcmp.ge.s32.totalorder %v438, 16
      %478 = vrot.lane.b32.xlu0 %v419, 17
      %v479 = vpop.permute.xlu0 %478
      %480 = vrot.lane.b32.xlu0 %v420, 17
      %v481 = vpop.permute.xlu0 %480
      %vm482 = vcmp.lt.s32.totalorder %v437, 17
      %v483 = vsel %vm482, %v479, %v481
      %v484 = vsel %vm482, %v481, %v479
      %485 = vrot.lane.b32.xlu0 %v404, 16
      %v486 = vpop.permute.xlu0 %485
      %487 = vrot.lane.b32.xlu0 %v405, 16
      %v488 = vpop.permute.xlu0 %487
      %vm489 = vcmp.lt.s32.totalorder %v437, 16
      %v490 = vsel %vm489, %v486, %v488
      %v491 = vsel %vm489, %v488, %v486
      %492 = vrot.lane.b32.xlu0 %v434, 15
      %v493 = vpop.permute.xlu0 %492
      %494 = vrot.lane.b32.xlu0 %v435, 15
      %v495 = vpop.permute.xlu0 %494
      %vm496 = vcmp.lt.s32.totalorder %v437, 15
      %v497 = vsel %vm496, %v493, %v495
      %v498 = vsel %vm496, %v495, %v493
      %499 = vset.pattern.permute.xlu0 0
      %500 = vperm.xlu0 %499, %v406
      %v501 = vpop.permute.xlu0 %500
      %v503 = vmul.f32 %v484, %v501
      %v504 = vmul.f32 %v483, %v501
      %505 = vset.pattern.permute.xlu0 1
      %506 = vperm.xlu0 %505, %v406
      %v507 = vpop.permute.xlu0 %506
      %v509 = vmul.f32 %v491, %v507
      %v510 = vmul.f32 %v490, %v507
      %v511 = vadd.f32 %v503, %v509
      %v512 = vadd.f32 %v504, %v510
      %513 = vset.pattern.permute.xlu0 2
      %514 = vperm.xlu0 %513, %v406
      %v515 = vpop.permute.xlu0 %514
      %v517 = vmul.f32 %v498, %v515
      %v518 = vmul.f32 %v497, %v515
      %v519 = vadd.f32 %v511, %v517
      %v520 = vadd.f32 %v512, %v518
      %v521 = vsel %vm476, 1, 0
      %v522 = vsel %vm477, 1, 0
      %vm523 = vcmp.eq.s32.totalorder %v521, 1
      %vm524 = vcmp.eq.s32.totalorder %v522, 1
      %v525 = vsel %vm523, %v519, 0.0
      %v526 = vsel %vm524, %v520, 0.0
      %v527 = vadd.f32 %v474, %v525
      %v528 = vadd.f32 %v475, %v526
      %vm529 = vcmp.lt.s32.totalorder %v437, 240
      %vm530 = vcmp.lt.s32.totalorder %v438, 240
      %531 = vrot.lane.b32.xlu0 %v419, 113
      %v532 = vpop.permute.xlu0 %531
      %533 = vrot.lane.b32.xlu0 %v420, 113
      %v534 = vpop.permute.xlu0 %533
      %vm535 = vcmp.lt.s32.totalorder %v437, 113
      %v536 = vsel %vm535, %v532, %v534
      %v537 = vsel %vm535, %v534, %v532
      %538 = vrot.lane.b32.xlu0 %v404, 112
      %v539 = vpop.permute.xlu0 %538
      %540 = vrot.lane.b32.xlu0 %v405, 112
      %v541 = vpop.permute.xlu0 %540
      %vm542 = vcmp.lt.s32.totalorder %v437, 112
      %v543 = vsel %vm542, %v539, %v541
      %v544 = vsel %vm542, %v541, %v539
      %545 = vrot.lane.b32.xlu0 %v434, 111
      %v546 = vpop.permute.xlu0 %545
      %547 = vrot.lane.b32.xlu0 %v435, 111
      %v548 = vpop.permute.xlu0 %547
      %vm549 = vcmp.lt.s32.totalorder %v437, 111
      %v550 = vsel %vm549, %v546, %v548
      %v551 = vsel %vm549, %v548, %v546
      %552 = vset.pattern.permute.xlu0 6
      %553 = vperm.xlu0 %552, %v406
      %v554 = vpop.permute.xlu0 %553
      %v556 = vmul.f32 %v536, %v554
      %v557 = vmul.f32 %v537, %v554
      %558 = vset.pattern.permute.xlu0 7
      %559 = vperm.xlu0 %558, %v406
      %v560 = vpop.permute.xlu0 %559
      %v562 = vmul.f32 %v543, %v560
      %v563 = vmul.f32 %v544, %v560
      %v564 = vadd.f32 %v556, %v562
      %v565 = vadd.f32 %v557, %v563
      %566 = vset.pattern.permute.xlu0 8
      %567 = vperm.xlu0 %566, %v406
      %v568 = vpop.permute.xlu0 %567
      %v570 = vmul.f32 %v550, %v568
      %v571 = vmul.f32 %v551, %v568
      %v572 = vadd.f32 %v564, %v570
      %v573 = vadd.f32 %v565, %v571
      %v574 = vsel %vm529, 1, 0
      %v575 = vsel %vm530, 1, 0
      %vm576 = vcmp.eq.s32.totalorder %v574, 1
      %vm577 = vcmp.eq.s32.totalorder %v575, 1
      %v578 = vsel %vm576, %v572, 0.0
      %v579 = vsel %vm577, %v573, 0.0
      %v580 = vadd.f32 %v527, %v578
      %v581 = vadd.f32 %v528, %v579
      %582 = vst [vmem:[%s358] sm:$0xff] %v580
      %583 = vst [vmem:[%s358 + $0x8] sm:$0xff] %v581
      %p584 = scmp.lt.s32.totalorder %s21, 1
      %s585 = scalar_select %p584, %s21, 1
      %p586 = scmp.lt.s32.totalorder %s22, 0
      %s587 = scalar_select %p586, %s22, 0
      %s588 = smul.addr %s587, 2
      %s589 = smul.addr %s585, 2
      %s590 = sadd.s32 %s588, %s589
      %s591 = smul.addr %s590, 8
      %s592 = scalar_lea.vmem %s6, %s591
      // Predicated region
      $region45: #{glf_forward.4} parent=43 // pred_check
        %p593 = pneg %p202
      $region46: #{glf_forward.4} parent=43 // pred_check_branch
        %595 = sbr.rel (%p593) target = $region48
      $region47: #{glf_forward.4} parent=43 // pred_region
        _
      $region48: #{glf_forward.4} parent=43 // pred_fallthru
        _
    $region44: #{glf_forward.4} parent=5 // pred_fallthru
      _
    %p596 = scmp.le.s32.totalorder 2, %s12
    // Predicated region
    $region49: #{glf_forward.4} parent=5 // pred_check
      %p597 = pneg %p596
    $region50: #{glf_forward.4} parent=5 // pred_check_branch
      %599 = sbr.rel (%p597) target = $region52
    $region51: #{glf_forward.4} parent=5 // pred_region
      %s600 = ssub.s32 %s12, 2
      // Predicated region
      $region53: #{glf_forward.4} parent=51 // pred_check
        %p601 = pneg %p208
      $region54: #{glf_forward.4} parent=51 // pred_check_branch
        %603 = sbr.rel (%p601) target = $region56
      $region55: #{glf_forward.4} parent=51 // pred_region
        %p604 = scmp.lt.s32.totalorder %s23, 1
        %s605 = scalar_select %p604, %s23, 1
        %p606 = scmp.lt.s32.totalorder %s24, 0
        %s607 = scalar_select %p606, %s24, 0
        %s608 = smul.addr %s607, 2
        %s609 = smul.addr %s605, 2
        %s610 = sadd.s32 %s608, %s609
        %s611 = smul.addr %s610, 8
        %s612 = scalar_lea.vmem %s6, %s611
      $region56: #{glf_forward.4} parent=51 // pred_fallthru
        _
    $region52: #{glf_forward.4} parent=5 // pred_fallthru
      _
  $region6: #{glf_forward.4} parent=0 // loop_footer
    %s16 = sadd.s32 1, %s12
  $region7: #{glf_forward.4} parent=0 // loop_footer_branch
    %11 = sbr.rel target = $region3
  $region8: #{glf_forward.4} parent=0 // loop_exit
    _

// kernel: glf_forward.5
$region0: #{glf_forward.5}
  #allocation0 [shape = 'u32[]', space=smem, size = 0x4, offset = 0x4, fixed_abs, tag = 'smem constant byte address 0x4 - core index']
  #allocation1 [shape = 'u32[144,128]{1,0:T(1,128)}', space=vmem, size = 0x12000, scoped, tag = 'internal scratch']
  %s0 = inlined_call_operand.vmem [shape: f32[2,8,256], index: 0, kind: input, shape index: {}]
  %s1 = inlined_call_operand.vmem [shape: f32[2,8,256], index: 1, kind: input, shape index: {}]
  %s2 = inlined_call_operand.vmem [shape: f32[8,1], index: 2, kind: input, shape index: {}]
  %s3 = inlined_call_operand.vmem [shape: f32[8,1], index: 3, kind: input, shape index: {}]
  %s4 = inlined_call_operand.vmem [shape: f32[8,1], index: 4, kind: input, shape index: {}]
  %s5 = inlined_call_operand.vmem [shape: f32[8,1], index: 5, kind: input, shape index: {}]
  %s6 = inlined_call_operand.vmem [shape: f32[16,8], index: 6, kind: input, shape index: {}]
  %s7 = inlined_call_operand.vmem [shape: f32[16,8], index: 7, kind: input, shape index: {}]
  %s8 = inlined_call_operand.vmem [shape: f32[2,16,256], index: 8, kind: output, shape index: {}]
  %s9 = sld [smem:[#allocation0]]
  $region99: #{glf_forward.5} parent=0
    _
  %s11 = ssub.s32 1, %s9
  %s12 = scalar_select 0, %s11, %s9
  $region1: #{glf_forward.5} parent=0
    #allocation2 [shape = 'u8[16384]{0}', space=vmem, size = 0x4000, scoped, tag = 'output window, operand 0']
    loop: start=0, step=1, limit=6
    $region2: #{glf_forward.5} parent=1 // loop_pre_header
      _
    $region3: #{glf_forward.5} parent=1 // loop_header
      %s14 = sphi 0, %s18
      %p15 = scmp.ge.s32.totalorder %s14, 6
      %s21 = sphi 0, %s33
      %s22 = sphi 0, %s29
      %s23 = sphi 0, %s21
      %s24 = sphi 0, %s22
      %s25 = sphi 0, %s23
      %s26 = sphi 0, %s24
      %s38 = sphi 0, %s40
      %s41 = sphi 0, %s38
      %s42 = sphi 0, %s41
      %s58 = sphi 0, %s42
      %s66 = sphi 0, %s68
      %s69 = sphi 0, %s66
      %s70 = sphi 0, %s69
      %s86 = sphi 0, %s70
      %s90 = sphi 0, %s90
      %s92 = sphi 0, %s90
      %s93 = sphi 0, %s92
      %s107 = sphi 0, %s93
      %s111 = sphi 0, %s111
      %s113 = sphi 0, %s111
      %s114 = sphi 0, %s113
      %s128 = sphi 0, %s114
      %s132 = sphi 0, %s132
      %s134 = sphi 0, %s132
      %s135 = sphi 0, %s134
      %s149 = sphi 0, %s135
      %s153 = sphi 0, %s153
      %s155 = sphi 0, %s153
      %s156 = sphi 0, %s155
      %s170 = sphi 0, %s156
      %s174 = sphi 0, %s174
      %s176 = sphi 0, %s174
      %s177 = sphi 0, %s176
      %s191 = sphi 0, %s177
      %s195 = sphi 0, %s195
      %s197 = sphi 0, %s195
      %s198 = sphi 0, %s197
      %s212 = sphi 0, %s198
      %s220 = sphi 0, %s222
      %s223 = sphi 0, %s220
      %s224 = sphi 0, %s223
      %s240 = sphi 0, %s224
    $region4: #{glf_forward.5} parent=1 // loop_header_branch
      %17 = sbr.rel (%p15) target = $region8
    $region5: #{glf_forward.5} parent=1 // loop_body
      %s19 = ssub.s32 %s14, 1
      %s20 = ssub.s32 %s14, 2
      %s27 = sadd.s32 1, %s22
      %p28 = scmp.ge.s32.totalorder %s27, 2
      %s29 = scalar_select %p28, 0, %s27
      %s30 = sadd.s32 1, %s21
      %s31 = scalar_select %p28, %s30, %s21
      %p32 = scmp.ge.s32.totalorder %s31, 2
      %s33 = scalar_select %p32, 0, %s31
      %s34 = ssub.s32 %s21, %s33
      %s35 = ssub.s32 %s22, %s29
      %s36 = sor.u32 %s34, %s35
      %p37 = scmp.eq.s32.totalorder %s36, 0
      %s39 = sadd.s32 %s38, 1
      %s40 = scalar_select %p37, %s38, %s39
      %p43 = pneg %p37
      %p44 = scmp.eq.s32.totalorder %s14, 3
      %p45 = por %p43, %p44
      %p46 = scmp.ne.s32.totalorder %s38, %s41
      %p47 = scmp.eq.s32.totalorder %s14, 0
      %p48 = por %p46, %p47
      %p49 = scmp.ne.s32.totalorder %s38, %s41
      %p50 = scmp.eq.s32.totalorder %s19, 3
      %p51 = por %p49, %p50
      %p52 = scmp.ne.s32.totalorder %s41, %s42
      %p53 = scmp.eq.s32.totalorder %s19, 0
      %p54 = por %p52, %p53
      %p55 = scmp.ne.s32.totalorder %s41, %s42
      %p56 = scmp.eq.s32.totalorder %s20, 3
      %p57 = por %p55, %p56
      %p59 = scmp.ne.s32.totalorder %s42, %s58
      %p60 = scmp.eq.s32.totalorder %s20, 0
      %p61 = por %p59, %p60
      %s62 = ssub.s32 %s21, %s33
      %s63 = ssub.s32 %s22, %s29
      %s64 = sor.u32 %s62, %s63
      %p65 = scmp.eq.s32.totalorder %s64, 0
      %s67 = sadd.s32 %s66, 1
      %s68 = scalar_select %p65, %s66, %s67
      %p71 = pneg %p65
      %p72 = scmp.eq.s32.totalorder %s14, 3
      %p73 = por %p71, %p72
      %p74 = scmp.ne.s32.totalorder %s66, %s69
      %p75 = scmp.eq.s32.totalorder %s14, 0
      %p76 = por %p74, %p75
      %p77 = scmp.ne.s32.totalorder %s66, %s69
      %p78 = scmp.eq.s32.totalorder %s19, 3
      %p79 = por %p77, %p78
      %p80 = scmp.ne.s32.totalorder %s69, %s70
      %p81 = scmp.eq.s32.totalorder %s19, 0
      %p82 = por %p80, %p81
      %p83 = scmp.ne.s32.totalorder %s69, %s70
      %p84 = scmp.eq.s32.totalorder %s20, 3
      %p85 = por %p83, %p84
      %p87 = scmp.ne.s32.totalorder %s70, %s86
      %p88 = scmp.eq.s32.totalorder %s20, 0
      %p89 = por %p87, %p88
      %s91 = sadd.s32 %s90, 1
      %p94 = scmp.eq.s32.totalorder %s14, 3
      %p95 = scmp.ne.s32.totalorder %s90, %s92
      %p96 = scmp.eq.s32.totalorder %s14, 0
      %p97 = por %p95, %p96
      %p98 = scmp.ne.s32.totalorder %s90, %s92
      %p99 = scmp.eq.s32.totalorder %s19, 3
      %p100 = por %p98, %p99
      %p101 = scmp.ne.s32.totalorder %s92, %s93
      %p102 = scmp.eq.s32.totalorder %s19, 0
      %p103 = por %p101, %p102
      %p104 = scmp.ne.s32.totalorder %s92, %s93
      %p105 = scmp.eq.s32.totalorder %s20, 3
      %p106 = por %p104, %p105
      %p108 = scmp.ne.s32.totalorder %s93, %s107
      %p109 = scmp.eq.s32.totalorder %s20, 0
      %p110 = por %p108, %p109
      %s112 = sadd.s32 %s111, 1
      %p115 = scmp.eq.s32.totalorder %s14, 3
      %p116 = scmp.ne.s32.totalorder %s111, %s113
      %p117 = scmp.eq.s32.totalorder %s14, 0
      %p118 = por %p116, %p117
      %p119 = scmp.ne.s32.totalorder %s111, %s113
      %p120 = scmp.eq.s32.totalorder %s19, 3
      %p121 = por %p119, %p120
      %p122 = scmp.ne.s32.totalorder %s113, %s114
      %p123 = scmp.eq.s32.totalorder %s19, 0
      %p124 = por %p122, %p123
      %p125 = scmp.ne.s32.totalorder %s113, %s114
      %p126 = scmp.eq.s32.totalorder %s20, 3
      %p127 = por %p125, %p126
      %p129 = scmp.ne.s32.totalorder %s114, %s128
      %p130 = scmp.eq.s32.totalorder %s20, 0
      %p131 = por %p129, %p130
      %s133 = sadd.s32 %s132, 1
      %p136 = scmp.eq.s32.totalorder %s14, 3
      %p137 = scmp.ne.s32.totalorder %s132, %s134
      %p138 = scmp.eq.s32.totalorder %s14, 0
      %p139 = por %p137, %p138
      %p140 = scmp.ne.s32.totalorder %s132, %s134
      %p141 = scmp.eq.s32.totalorder %s19, 3
      %p142 = por %p140, %p141
      %p143 = scmp.ne.s32.totalorder %s134, %s135
      %p144 = scmp.eq.s32.totalorder %s19, 0
      %p145 = por %p143, %p144
      %p146 = scmp.ne.s32.totalorder %s134, %s135
      %p147 = scmp.eq.s32.totalorder %s20, 3
      %p148 = por %p146, %p147
      %p150 = scmp.ne.s32.totalorder %s135, %s149
      %p151 = scmp.eq.s32.totalorder %s20, 0
      %p152 = por %p150, %p151
      %s154 = sadd.s32 %s153, 1
      %p157 = scmp.eq.s32.totalorder %s14, 3
      %p158 = scmp.ne.s32.totalorder %s153, %s155
      %p159 = scmp.eq.s32.totalorder %s14, 0
      %p160 = por %p158, %p159
      %p161 = scmp.ne.s32.totalorder %s153, %s155
      %p162 = scmp.eq.s32.totalorder %s19, 3
      %p163 = por %p161, %p162
      %p164 = scmp.ne.s32.totalorder %s155, %s156
      %p165 = scmp.eq.s32.totalorder %s19, 0
      %p166 = por %p164, %p165
      %p167 = scmp.ne.s32.totalorder %s155, %s156
      %p168 = scmp.eq.s32.totalorder %s20, 3
      %p169 = por %p167, %p168
      %p171 = scmp.ne.s32.totalorder %s156, %s170
      %p172 = scmp.eq.s32.totalorder %s20, 0
      %p173 = por %p171, %p172
      %s175 = sadd.s32 %s174, 1
      %p178 = scmp.eq.s32.totalorder %s14, 3
      %p179 = scmp.ne.s32.totalorder %s174, %s176
      %p180 = scmp.eq.s32.totalorder %s14, 0
      %p181 = por %p179, %p180
      %p182 = scmp.ne.s32.totalorder %s174, %s176
      %p183 = scmp.eq.s32.totalorder %s19, 3
      %p184 = por %p182, %p183
      %p185 = scmp.ne.s32.totalorder %s176, %s177
      %p186 = scmp.eq.s32.totalorder %s19, 0
      %p187 = por %p185, %p186
      %p188 = scmp.ne.s32.totalorder %s176, %s177
      %p189 = scmp.eq.s32.totalorder %s20, 3
      %p190 = por %p188, %p189
      %p192 = scmp.ne.s32.totalorder %s177, %s191
      %p193 = scmp.eq.s32.totalorder %s20, 0
      %p194 = por %p192, %p193
      %s196 = sadd.s32 %s195, 1
      %p199 = scmp.eq.s32.totalorder %s14, 3
      %p200 = scmp.ne.s32.totalorder %s195, %s197
      %p201 = scmp.eq.s32.totalorder %s14, 0
      %p202 = por %p200, %p201
      %p203 = scmp.ne.s32.totalorder %s195, %s197
      %p204 = scmp.eq.s32.totalorder %s19, 3
      %p205 = por %p203, %p204
      %p206 = scmp.ne.s32.totalorder %s197, %s198
      %p207 = scmp.eq.s32.totalorder %s19, 0
      %p208 = por %p206, %p207
      %p209 = scmp.ne.s32.totalorder %s197, %s198
      %p210 = scmp.eq.s32.totalorder %s20, 3
      %p211 = por %p209, %p210
      %p213 = scmp.ne.s32.totalorder %s198, %s212
      %p214 = scmp.eq.s32.totalorder %s20, 0
      %p215 = por %p213, %p214
      %s216 = ssub.s32 %s21, %s33
      %s217 = ssub.s32 %s22, %s29
      %s218 = sor.u32 %s216, %s217
      %p219 = scmp.eq.s32.totalorder %s218, 0
      %s221 = sadd.s32 %s220, 1
      %s222 = scalar_select %p219, %s220, %s221
      %p225 = pneg %p219
      %p226 = scmp.eq.s32.totalorder %s14, 3
      %p227 = por %p225, %p226
      %p228 = scmp.ne.s32.totalorder %s220, %s223
      %p229 = scmp.eq.s32.totalorder %s14, 0
      %p230 = por %p228, %p229
      %p231 = scmp.ne.s32.totalorder %s220, %s223
      %p232 = scmp.eq.s32.totalorder %s19, 3
      %p233 = por %p231, %p232
      %p234 = scmp.ne.s32.totalorder %s223, %s224
      %p235 = scmp.eq.s32.totalorder %s19, 0
      %p236 = por %p234, %p235
      %p237 = scmp.ne.s32.totalorder %s223, %s224
      %p238 = scmp.eq.s32.totalorder %s20, 3
      %p239 = por %p237, %p238
      %p241 = scmp.ne.s32.totalorder %s224, %s240
      %p242 = scmp.eq.s32.totalorder %s20, 0
      %p243 = por %p241, %p242
      %p244 = scmp.le.s32.totalorder 1, %s14
      %p245 = scmp.lt.s32.totalorder %s14, 5
      %p246 = pnand %p244, %p245
      %p247 = pneg %p246
      // Predicated region
      $region9: #{glf_forward.5} parent=5 // pred_check
        _
      $region10: #{glf_forward.5} parent=5 // pred_check_branch
        %249 = sbr.rel (%p246) target = $region12
      $region11: #{glf_forward.5} parent=5 // pred_region
        %s250 = ssub.s32 %s14, 1
        // Predicated region
        $region13: #{glf_forward.5} parent=11 // pred_check
          %p251 = pneg %p103
        $region14: #{glf_forward.5} parent=11 // pred_check_branch
          %253 = sbr.rel (%p251) target = $region16
        $region15: #{glf_forward.5} parent=11 // pred_region
          _
        $region16: #{glf_forward.5} parent=11 // pred_fallthru
          _
        // Predicated region
        $region17: #{glf_forward.5} parent=11 // pred_check
          %p254 = pneg %p124
        $region18: #{glf_forward.5} parent=11 // pred_check_branch
          %256 = sbr.rel (%p254) target = $region20
        $region19: #{glf_forward.5} parent=11 // pred_region
          _
        $region20: #{glf_forward.5} parent=11 // pred_fallthru
          _
        // Predicated region
        $region21: #{glf_forward.5} parent=11 // pred_check
          %p257 = pneg %p145
        $region22: #{glf_forward.5} parent=11 // pred_check_branch
          %259 = sbr.rel (%p257) target = $region24
        $region23: #{glf_forward.5} parent=11 // pred_region
          _
        $region24: #{glf_forward.5} parent=11 // pred_fallthru
          _
        // Predicated region
        $region25: #{glf_forward.5} parent=11 // pred_check
          %p260 = pneg %p166
        $region26: #{glf_forward.5} parent=11 // pred_check_branch
          %262 = sbr.rel (%p260) target = $region28
        $region27: #{glf_forward.5} parent=11 // pred_region
          _
        $region28: #{glf_forward.5} parent=11 // pred_fallthru
          _
        // Predicated region
        $region29: #{glf_forward.5} parent=11 // pred_check
          %p263 = pneg %p187
        $region30: #{glf_forward.5} parent=11 // pred_check_branch
          %265 = sbr.rel (%p263) target = $region32
        $region31: #{glf_forward.5} parent=11 // pred_region
          _
        $region32: #{glf_forward.5} parent=11 // pred_fallthru
          _
        // Predicated region
        $region33: #{glf_forward.5} parent=11 // pred_check
          %p266 = pneg %p208
        $region34: #{glf_forward.5} parent=11 // pred_check_branch
          %268 = sbr.rel (%p266) target = $region36
        $region35: #{glf_forward.5} parent=11 // pred_region
          _
        $region36: #{glf_forward.5} parent=11 // pred_fallthru
          _
      $region12: #{glf_forward.5} parent=5 // pred_fallthru
        _
      %p269 = scmp.lt.s32.totalorder %s14, 4
      // Predicated region
      $region37: #{glf_forward.5} parent=5 // pred_check
        %p270 = pneg %p269
      $region38: #{glf_forward.5} parent=5 // pred_check_branch
        %272 = sbr.rel (%p270) target = $region40
      $region39: #{glf_forward.5} parent=5 // pred_region
        // Predicated region
        $region41: #{glf_forward.5} parent=39 // pred_check
          %p273 = pneg %p48
        $region42: #{glf_forward.5} parent=39 // pred_check_branch
          %275 = sbr.rel (%p273) target = $region44
        $region43: #{glf_forward.5} parent=39 // pred_region
          %p276 = scmp.lt.s32.totalorder %s21, 1
          %s277 = scalar_select %p276, %s21, 1
          %p278 = scmp.lt.s32.totalorder %s22, 1
          %s279 = scalar_select %p278, %s22, 1
          %s280 = smul.addr %s277, 2
          %s281 = sadd.s32 %s279, %s280
          %s282 = smul.addr %s281, 8
          %s283 = scalar_lea.vmem %s0, %s282
        $region44: #{glf_forward.5} parent=39 // pred_fallthru
          _
        // Predicated region
        $region45: #{glf_forward.5} parent=39 // pred_check
          %p284 = pneg %p76
        $region46: #{glf_forward.5} parent=39 // pred_check_branch
          %286 = sbr.rel (%p284) target = $region48
        $region47: #{glf_forward.5} parent=39 // pred_region
          %p287 = scmp.lt.s32.totalorder %s21, 1
          %s288 = scalar_select %p287, %s21, 1
          %p289 = scmp.lt.s32.totalorder %s22, 1
          %s290 = scalar_select %p289, %s22, 1
          %s291 = smul.addr %s288, 2
          %s292 = sadd.s32 %s290, %s291
          %s293 = smul.addr %s292, 8
          %s294 = scalar_lea.vmem %s1, %s293
        $region48: #{glf_forward.5} parent=39 // pred_fallthru
          _
      $region40: #{glf_forward.5} parent=5 // pred_fallthru
        _
      %p295 = scmp.le.s32.totalorder 1, %s14
      %p296 = scmp.lt.s32.totalorder %s14, 5
      %p297 = pnand %p295, %p296
      %p298 = pneg %p297
      // Predicated region
      $region49: #{glf_forward.5} parent=5 // pred_check
        _
      $region50: #{glf_forward.5} parent=5 // pred_check_branch
        %300 = sbr.rel (%p297) target = $region52
      $region51: #{glf_forward.5} parent=5 // pred_region
        %s301 = ssub.s32 %s14, 1
        %p302 = scmp.lt.s32.totalorder %s23, 1
        %s303 = scalar_select %p302, %s23, 1
        %p304 = scmp.lt.s32.totalorder %s24, 1
        %s305 = scalar_select %p304, %s24, 1
        %s306 = smul.addr %s303, 2
        %s307 = sadd.s32 %s305, %s306
        %s308 = smul.addr %s307, 8
        %s309 = scalar_lea.vmem %s0, %s308
        %p310 = pneg %p54
        %p311 = pneg %p51
        %p312 = scmp.lt.s32.totalorder %s23, 1
        %s313 = scalar_select %p312, %s23, 1
        %p314 = scmp.lt.s32.totalorder %s24, 1
        %s315 = scalar_select %p314, %s24, 1
        %s316 = smul.addr %s313, 2
        %s317 = sadd.s32 %s315, %s316
        %s318 = smul.addr %s317, 8
        %s319 = scalar_lea.vmem %s1, %s318
        %p320 = pneg %p82
        %p321 = pneg %p79
        %p322 = pneg %p103
        %p323 = pneg %p100
        %p324 = pneg %p124
        %p325 = pneg %p121
        %p326 = pneg %p145
        %p327 = pneg %p142
        %p328 = pneg %p166
        %p329 = pneg %p163
        %p330 = pneg %p187
        %p331 = pneg %p184
        %p332 = pneg %p208
        %p333 = pneg %p205
        %p334 = pneg %p236
        %p335 = pneg %p233
        %s336 = sand.u32 %s223, 1
        %s337 = sand.u32 %s223, 1
        %s338 = smul.addr %s337, 16
        %s339 = scalar_lea.vmem [#allocation2], %s338
        %p340 = scmp.lt.s32.totalorder %s23, 1
        %s341 = scalar_select %p340, %s23, 1
        %p342 = scmp.lt.s32.totalorder %s24, 1
        %s343 = scalar_select %p342, %s24, 1
        %s344 = smul.addr %s341, 2
        %s345 = sadd.s32 %s343, %s344
        %s346 = smul.addr %s345, 8
        %s347 = scalar_lea.vmem %s0, %s346
        %p348 = scmp.lt.s32.totalorder %s23, 1
        %s349 = scalar_select %p348, %s23, 1
        %p350 = scmp.lt.s32.totalorder %s24, 1
        %s351 = scalar_select %p350, %s24, 1
        %s352 = smul.addr %s349, 2
        %s353 = sadd.s32 %s351, %s352
        %s354 = smul.addr %s353, 8
        %s355 = scalar_lea.vmem %s1, %s354
        %v356 = vld [vmem:[%s347] sm:$0xff]
        %v357 = vld [vmem:[%s355] sm:$0xff]
        %v358 = vrot.slane %v356, 4
        %v359 = vadd.f32 %v356, %v358
        %v360 = vrot.slane %v359, 2
        %v361 = vadd.f32 %v359, %v360
        %v362 = vrot.slane %v361, 1
        %v363 = vadd.f32 %v361, %v362
        %v364 = vrot.slane %v357, 4
        %v365 = vadd.f32 %v357, %v364
        %v366 = vrot.slane %v365, 2
        %v367 = vadd.f32 %v365, %v366
        %v368 = vrot.slane %v367, 1
        %v369 = vadd.f32 %v367, %v368
        %v370 = vadd.f32 %v363, %v369
        %v371 = vmul.f32 %v356, %v356
        %v372 = vrot.slane %v371, 4
        %v373 = vadd.f32 %v371, %v372
        %v374 = vrot.slane %v373, 2
        %v375 = vadd.f32 %v373, %v374
        %v376 = vrot.slane %v375, 1
        %v377 = vadd.f32 %v375, %v376
        %v378 = vmul.f32 %v357, %v357
        %v379 = vrot.slane %v378, 4
        %v380 = vadd.f32 %v378, %v379
        %v381 = vrot.slane %v380, 2
        %v382 = vadd.f32 %v380, %v381
        %v383 = vrot.slane %v382, 1
        %v384 = vadd.f32 %v382, %v383
        %v385 = vadd.f32 %v377, %v384
        %v386 = vmul.f32 %v370, 0.0625
        %v387 = vmul.f32 %v385, 0.0625
        %v388 = vmul.f32 %v386, %v386
        %v389 = vsub.f32 %v387, %v388
        %v390 = vmax.f32 %v389, 0.0
        %v391 = vadd.f32 %v390, 1e-06
        %v392 = vrsqrt.pop %v391
        %v393 = vsub.f32 %v356, %v386
        %v394 = vmul.f32 %v393, %v392
        %v395 = vld [vmem:[%s2] sm:$0xff]
        %397 = vset.pattern.permute.xlu0 0
        %398 = vperm.xlu0 %397, %v395
        %v399 = vpop.permute.xlu0 %398
        %v401 = vmul.f32 %v394, %v399
        %v402 = vld [vmem:[%s4] sm:$0xff]
        %404 = vset.pattern.permute.xlu0 0
        %405 = vperm.xlu0 %404, %v402
        %v406 = vpop.permute.xlu0 %405
        %v408 = vadd.f32 %v401, %v406
        %v409 = vsub.f32 %v357, %v386
        %v410 = vmul.f32 %v409, %v392
        %v411 = vld [vmem:[%s3] sm:$0xff]
        %413 = vset.pattern.permute.xlu0 0
        %414 = vperm.xlu0 %413, %v411
        %v415 = vpop.permute.xlu0 %414
        %v417 = vmul.f32 %v410, %v415
        %v418 = vld [vmem:[%s5] sm:$0xff]
        %420 = vset.pattern.permute.xlu0 0
        %421 = vperm.xlu0 %420, %v418
        %v422 = vpop.permute.xlu0 %421
        %v424 = vadd.f32 %v417, %v422
        %v425 = vld [vmem:[%s6] sm:$0xff]
        %v426 = vld [vmem:[%s6 + $0x8] sm:$0xff]
        %v427 = vld [vmem:[%s7] sm:$0xff]
        %v428 = vld [vmem:[%s7 + $0x8] sm:$0xff]
        %vm429 = vcmask 64512
        %v431 = vsel %vm429, %v427, 0
        %v434 = vsel %vm429, %v428, 0
        %436 = vmatprep.subr.mxu0 0.0
        %437 = vmatpush1.msra.mxu0 0.0
        %438 = vmatprep.subr.mxu0 0.0
        %439 = vmatpush1.msra.mxu0 0.0
        %440 = vmatprep.subr.mxu0 0.0
        %441 = vmatpush1.msra.mxu0 0.0
        %442 = vmatprep.subr.mxu0 0.0
        %443 = vmatpush1.msra.mxu0 0.0
        %444 = vmatprep.subr.mxu0 0.0
        %445 = vmatpush1.msra.mxu0 0.0
        %446 = vmatprep.subr.mxu0 0.0
        %447 = vmatpush1.msra.mxu0 0.0
        %448 = vmatprep.subr.mxu0 0.0
        %449 = vmatpush1.msra.mxu0 0.0
        %450 = vmatprep.subr.mxu0 0.0
        %451 = vmatpush1.msra.mxu0 0.0
        %452 = vmatprep.subr.mxu0 0.0
        %453 = vmatpush1.msra.mxu0 0.0
        %454 = vmatprep.subr.mxu0 0.0
        %455 = vmatpush1.msra.mxu0 0.0
        %456 = vmatprep.subr.mxu0 0.0
        %457 = vmatpush1.msra.mxu0 0.0
        %458 = vmatprep.subr.mxu0 0.0
        %459 = vmatpush1.msra.mxu0 0.0
        %460 = vmatprep.subr.mxu0 0.0
        %461 = vmatpush1.msra.mxu0 0.0
        %462 = vmatprep.subr.mxu0 0.0
        %463 = vmatpush1.msra.mxu0 0.0
        %464 = vmatprep.subr.mxu0 0.0
        %465 = vmatpush1.msra.mxu0 0.0
        %466 = vmatprep.subr.mxu0 0.0
        %467 = vmatpush1.msra.mxu0 %v424
        %468 = vmatprep.subr.mxu0 0.0
        %469 = vmatpush2.msra.mxu0 0.0
        %470 = vmatprep.subr.mxu0 0.0
        %471 = vmatpush2.msra.mxu0 0.0
        %472 = vmatprep.subr.mxu0 0.0
        %473 = vmatpush2.msra.mxu0 0.0
        %474 = vmatprep.subr.mxu0 0.0
        %475 = vmatpush2.msra.mxu0 0.0
        %476 = vmatprep.subr.mxu0 0.0
        %477 = vmatpush2.msra.mxu0 0.0
        %478 = vmatprep.subr.mxu0 0.0
        %479 = vmatpush2.msra.mxu0 0.0
        %480 = vmatprep.subr.mxu0 0.0
        %481 = vmatpush2.msra.mxu0 0.0
        %482 = vmatprep.subr.mxu0 0.0
        %483 = vmatpush2.msra.mxu0 0.0
        %484 = vmatprep.subr.mxu0 0.0
        %485 = vmatpush2.msra.mxu0 0.0
        %486 = vmatprep.subr.mxu0 0.0
        %487 = vmatpush2.msra.mxu0 0.0
        %488 = vmatprep.subr.mxu0 0.0
        %489 = vmatpush2.msra.mxu0 0.0
        %490 = vmatprep.subr.mxu0 0.0
        %491 = vmatpush2.msra.mxu0 0.0
        %492 = vmatprep.subr.mxu0 0.0
        %493 = vmatpush2.msra.mxu0 0.0
        %494 = vmatprep.subr.mxu0 0.0
        %495 = vmatpush2.msra.mxu0 0.0
        %496 = vmatprep.subr.mxu0 0.0
        %497 = vmatpush2.msra.mxu0 0.0
        %498 = vmatprep.subr.mxu0 0.0
        %499 = vmatpush2.msra.mxu0 0.0
        %500 = vmatprep.mubr.f32.mxu0 0.0
        %501 = vmatmul.mubr.f32.gmra.mxu0 %v431
        %v502 = vpop.f32.mrf.mxu0
        %v503 = vadd.f32 0.0, %v502
        %v504 = vpop.f32.mrf.mxu0
        %505 = vmatprep.mubr.f32.mxu0 0.0
        %506 = vmatmul.mubr.f32.gmra.mxu0 %v434
        %v507 = vpop.f32.mrf.mxu0
        %v508 = vadd.f32 0.0, %v507
        %v509 = vpop.f32.mrf.mxu0
        %510 = vdwg.mxu0
        %v512 = vsel %vm429, %v425, 0
        %v515 = vsel %vm429, %v426, 0
        %517 = vmatprep.subr.mxu0 0.0
        %518 = vmatpush1.msra.mxu0 0.0
        %519 = vmatprep.subr.mxu0 0.0
        %520 = vmatpush1.msra.mxu0 0.0
        %521 = vmatprep.subr.mxu0 0.0
        %522 = vmatpush1.msra.mxu0 0.0
        %523 = vmatprep.subr.mxu0 0.0
        %524 = vmatpush1.msra.mxu0 0.0
        %525 = vmatprep.subr.mxu0 0.0
        %526 = vmatpush1.msra.mxu0 0.0
        %527 = vmatprep.subr.mxu0 0.0
        %528 = vmatpush1.msra.mxu0 0.0
        %529 = vmatprep.subr.mxu0 0.0
        %530 = vmatpush1.msra.mxu0 0.0
        %531 = vmatprep.subr.mxu0 0.0
        %532 = vmatpush1.msra.mxu0 0.0
        %533 = vmatprep.subr.mxu0 0.0
        %534 = vmatpush1.msra.mxu0 0.0
        %535 = vmatprep.subr.mxu0 0.0
        %536 = vmatpush1.msra.mxu0 0.0
        %537 = vmatprep.subr.mxu0 0.0
        %538 = vmatpush1.msra.mxu0 0.0
        %539 = vmatprep.subr.mxu0 0.0
        %540 = vmatpush1.msra.mxu0 0.0
        %541 = vmatprep.subr.mxu0 0.0
        %542 = vmatpush1.msra.mxu0 0.0
        %543 = vmatprep.subr.mxu0 0.0
        %544 = vmatpush1.msra.mxu0 0.0
        %545 = vmatprep.subr.mxu0 0.0
        %546 = vmatpush1.msra.mxu0 0.0
        %547 = vmatprep.subr.mxu0 0.0
        %548 = vmatpush1.msra.mxu0 %v408
        %549 = vmatprep.subr.mxu0 0.0
        %550 = vmatpush2.msra.mxu0 0.0
        %551 = vmatprep.subr.mxu0 0.0
        %552 = vmatpush2.msra.mxu0 0.0
        %553 = vmatprep.subr.mxu0 0.0
        %554 = vmatpush2.msra.mxu0 0.0
        %555 = vmatprep.subr.mxu0 0.0
        %556 = vmatpush2.msra.mxu0 0.0
        %557 = vmatprep.subr.mxu0 0.0
        %558 = vmatpush2.msra.mxu0 0.0
        %559 = vmatprep.subr.mxu0 0.0
        %560 = vmatpush2.msra.mxu0 0.0
        %561 = vmatprep.subr.mxu0 0.0
        %562 = vmatpush2.msra.mxu0 0.0
        %563 = vmatprep.subr.mxu0 0.0
        %564 = vmatpush2.msra.mxu0 0.0
        %565 = vmatprep.subr.mxu0 0.0
        %566 = vmatpush2.msra.mxu0 0.0
        %567 = vmatprep.subr.mxu0 0.0
        %568 = vmatpush2.msra.mxu0 0.0
        %569 = vmatprep.subr.mxu0 0.0
        %570 = vmatpush2.msra.mxu0 0.0
        %571 = vmatprep.subr.mxu0 0.0
        %572 = vmatpush2.msra.mxu0 0.0
        %573 = vmatprep.subr.mxu0 0.0
        %574 = vmatpush2.msra.mxu0 0.0
        %575 = vmatprep.subr.mxu0 0.0
        %576 = vmatpush2.msra.mxu0 0.0
        %577 = vmatprep.subr.mxu0 0.0
        %578 = vmatpush2.msra.mxu0 0.0
        %579 = vmatprep.subr.mxu0 0.0
        %580 = vmatpush2.msra.mxu0 0.0
        %581 = vmatprep.mubr.f32.mxu0 0.0
        %582 = vmatmul.mubr.f32.gmra.mxu0 %v512
        %v583 = vpop.f32.mrf.mxu0
        %v584 = vadd.f32 %v503, %v583
        %v585 = vpop.f32.mrf.mxu0
        %586 = vmatprep.mubr.f32.mxu0 0.0
        %587 = vmatmul.mubr.f32.gmra.mxu0 %v515
        %v588 = vpop.f32.mrf.mxu0
        %v589 = vadd.f32 %v508, %v588
        %v590 = vpop.f32.mrf.mxu0
        %591 = vdwg.mxu0
        %592 = vst [vmem:[%s339] sm:$0xff] %v584
        %593 = vst [vmem:[%s339 + $0x8] sm:$0xff] %v589
        %s594 = sand.u32 %s223, 1
        %s595 = sand.u32 %s223, 1
        %s596 = smul.addr %s595, 16
        %s597 = scalar_lea.vmem [#allocation2], %s596
        // Predicated region
        $region53: #{glf_forward.5} parent=51 // pred_check
          %p598 = pneg %p233
        $region54: #{glf_forward.5} parent=51 // pred_check_branch
          %600 = sbr.rel (%p598) target = $region56
        $region55: #{glf_forward.5} parent=51 // pred_region
          %s601 = smul.addr %s23, 4
          %s602 = sadd.s32 %s24, %s601
          %s603 = smul.addr %s602, 8
          %s604 = scalar_lea.vmem %s8, %s603
          // Predicated region
          $region57: #{glf_forward.5} parent=55 // pred_check
            _
          $region58: #{glf_forward.5} parent=55 // pred_check_branch
            %606 = sbr.rel (0) target = $region60
          $region59: #{glf_forward.5} parent=55 // pred_region
            // Predicated region
            $region61: #{glf_forward.5} parent=59 // pred_check
              _
            $region62: #{glf_forward.5} parent=59 // pred_check_branch
              %608 = sbr.rel (0) target = $region64
            $region63: #{glf_forward.5} parent=59 // pred_region
              // Predicated region
              $region76: #{glf_forward.5} parent=63 // pred_check
                _
              $region77: #{glf_forward.5} parent=63 // pred_check_branch
                %626 = sbr.rel (0) target = $region79
              $region78: #{glf_forward.5} parent=63 // pred_region
                loop: start=0, step=1, limit=1
                $region80: #{glf_forward.5} parent=78 // loop_pre_header
                  _
                $region81: #{glf_forward.5} parent=78 // loop_header
                  %s628 = sphi 0, %s632
                  %p629 = scmp.ge.s32.totalorder %s628, 1
                  %s633 = sphi %s597, %s597
                  %s634 = sphi %s604, %s604
                $region82: #{glf_forward.5} parent=78 // loop_header_branch
                  %631 = sbr.rel (%p629) target = $region86
                $region83: #{glf_forward.5} parent=78 // loop_body
                  %v635 = vld [vmem:[%s633] sm:$0xff]
                  %636 = vst [vmem:[%s634] sm:$0xff] %v635
                  %v637 = vld [vmem:[%s633 + $0x8] sm:$0xff]
                  %638 = vst [vmem:[%s634 + $0x10] sm:$0xff] %v637
                $region84: #{glf_forward.5} parent=78 // loop_footer
                  %s632 = sadd.s32 1, %s628
                $region85: #{glf_forward.5} parent=78 // loop_footer_branch
                  %627 = sbr.rel target = $region81
                $region86: #{glf_forward.5} parent=78 // loop_exit
                  _
              $region79: #{glf_forward.5} parent=63 // pred_fallthru
                _
              // Predicated region
              $region87: #{glf_forward.5} parent=63 // pred_check
                _
              $region88: #{glf_forward.5} parent=63 // pred_check_branch
                %640 = sbr.rel target = $region90
              $region89: #{glf_forward.5} parent=63 // pred_region
                _
              $region90: #{glf_forward.5} parent=63 // pred_fallthru
                _
            $region64: #{glf_forward.5} parent=59 // pred_fallthru
              _
            // Predicated region
            $region65: #{glf_forward.5} parent=59 // pred_check
              _
            $region66: #{glf_forward.5} parent=59 // pred_check_branch
              %610 = sbr.rel target = $region68
            $region67: #{glf_forward.5} parent=59 // pred_region
              %s612 = ssub.s32 256, 1
              loop: start=0, step=1, limit=1
              $region69: #{glf_forward.5} parent=67 // loop_pre_header
                _
              $region70: #{glf_forward.5} parent=67 // loop_header
                %s614 = sphi 0, %s618
                %p615 = scmp.ge.s32.totalorder %s614, 1
                %s619 = sphi %s597, %s597
                %s620 = sphi %s604, %s604
              $region71: #{glf_forward.5} parent=67 // loop_header_branch
                %617 = sbr.rel (%p615) target = $region75
              $region72: #{glf_forward.5} parent=67 // loop_body
                %v621 = vld [vmem:[%s619] sm:%s612]
                %622 = vst [vmem:[%s620] sm:%s612] %v621
                %v623 = vld [vmem:[%s619 + $0x8] sm:%s612]
                %624 = vst [vmem:[%s620 + $0x10] sm:%s612] %v623
              $region73: #{glf_forward.5} parent=67 // loop_footer
                %s618 = sadd.s32 1, %s614
              $region74: #{glf_forward.5} parent=67 // loop_footer_branch
                %613 = sbr.rel target = $region70
              $region75: #{glf_forward.5} parent=67 // loop_exit
                _
            $region68: #{glf_forward.5} parent=59 // pred_fallthru
              _
          $region60: #{glf_forward.5} parent=55 // pred_fallthru
            _
          %641 = vnop
        $region56: #{glf_forward.5} parent=51 // pred_fallthru
          _
      $region52: #{glf_forward.5} parent=5 // pred_fallthru
        _
      %p642 = scmp.le.s32.totalorder 2, %s14
      // Predicated region
      $region91: #{glf_forward.5} parent=5 // pred_check
        %p643 = pneg %p642
      $region92: #{glf_forward.5} parent=5 // pred_check_branch
        %645 = sbr.rel (%p643) target = $region94
      $region93: #{glf_forward.5} parent=5 // pred_region
        %s646 = ssub.s32 %s14, 2
        // Predicated region
        $region95: #{glf_forward.5} parent=93 // pred_check
          %p647 = pneg %p239
        $region96: #{glf_forward.5} parent=93 // pred_check_branch
          %649 = sbr.rel (%p647) target = $region98
        $region97: #{glf_forward.5} parent=93 // pred_region
          %s650 = sand.u32 %s224, 1
          %s651 = sand.u32 %s224, 1
          %s652 = smul.addr %s651, 16
          %s653 = scalar_lea.vmem [#allocation2], %s652
        $region98: #{glf_forward.5} parent=93 // pred_fallthru
          _
      $region94: #{glf_forward.5} parent=5 // pred_fallthru
        _
    $region6: #{glf_forward.5} parent=1 // loop_footer
      %s18 = sadd.s32 1, %s14
    $region7: #{glf_forward.5} parent=1 // loop_footer_branch
      %13 = sbr.rel target = $region3
    $region8: #{glf_forward.5} parent=1 // loop_exit
      _

</llo_original>
